<compile_context>
chip_gen: v7x
topology: tpu7x:2x2x1
jax: 0.10.0
libtpu: 0.0.40
codegen_flags: <defaults>
</compile_context>

<pallas_src>
import jax
import jax.numpy as jnp
from jax import lax
from jax.experimental import pallas as pl
from jax.experimental.pallas import tpu as pltpu

C1 = 64    # conv1 out channels (fixed by the module)
C2 = 128   # conv2 out channels (fixed by the module)


def _round_up(x, m):
    return (x + m - 1) // m * m


def cnn_bilstm_kernel(xp_ref, w1_ref, b1_ref, w2_ref, b2_ref,
                      wih_f_ref, whh_f_ref, b_f_ref,
                      wih_b_ref, b_b_ref,
                      wfc_f_ref, wfc_b_ref, bfc_ref,
                      out_ref,
                      gin_ref):
    T = gin_ref.shape[0]
    TB = gin_ref.shape[1]
    Cin = xp_ref.shape[2]
    H = whh_f_ref.shape[0]
    G = 4 * H

    # ---- conv1 (k=3, pad=1) + ReLU: three whole-sequence shifted matmuls ----
    # time-major flat layout: row block [t*TB, (t+1)*TB) is time step t; a time shift
    # of k is a (sublane-aligned) row shift of k*TB.
    xflat = xp_ref[...].reshape((T + 2) * TB, Cin)           # ((T+2)*TB, Cin)
    acc1 = jnp.dot(xflat[0 * TB:(0 + T) * TB, :], w1_ref[0],
                   preferred_element_type=jnp.float32)
    acc1 = acc1 + jnp.dot(xflat[1 * TB:(1 + T) * TB, :], w1_ref[1],
                          preferred_element_type=jnp.float32)
    acc1 = acc1 + jnp.dot(xflat[2 * TB:(2 + T) * TB, :], w1_ref[2],
                          preferred_element_type=jnp.float32)
    h1 = jnp.maximum(acc1 + b1_ref[...], 0.0)                # (T*TB, C1)

    # ---- conv2 (k=3, pad=1) + ReLU: same trick on the time-padded conv1 output ----
    zpad = jnp.zeros((TB, C1), jnp.float32)
    h1p = jnp.concatenate([zpad, h1, zpad], axis=0)          # ((T+2)*TB, C1)
    acc2 = jnp.dot(h1p[0 * TB:(0 + T) * TB, :], w2_ref[0],
                   preferred_element_type=jnp.float32)
    acc2 = acc2 + jnp.dot(h1p[1 * TB:(1 + T) * TB, :], w2_ref[1],
                          preferred_element_type=jnp.float32)
    acc2 = acc2 + jnp.dot(h1p[2 * TB:(2 + T) * TB, :], w2_ref[2],
                          preferred_element_type=jnp.float32)
    h2 = jnp.maximum(acc2 + b2_ref[...], 0.0)                # (T*TB, C2)

    # ---- hoist the LSTM input projection (x_t @ W_ih + b) out of the recurrence ----
    gin = (jnp.dot(h2, wih_f_ref[...], preferred_element_type=jnp.float32)
           + b_f_ref[...])                                   # (T*TB, 4H)
    gin_ref[...] = gin.reshape(T, TB, G)

    # hoisted lane mask: gate g (tanh) occupies lanes [2H, 3H); i/f/o use sigmoid
    lane = lax.broadcasted_iota(jnp.int32, (1, G), 1)
    tanh_mask = jnp.broadcast_to(
        jnp.logical_and(lane >= 2 * H, lane < 3 * H), (TB, G))

    whh_f = whh_f_ref[...]                                   # (H, 4H), resident
    h0 = jnp.zeros((TB, H), jnp.float32)
    c0 = jnp.zeros((TB, H), jnp.float32)

    # ---- forward-direction LSTM recurrence (only the recurrent matmul per step) ----
    def fwd_body(t, carry):
        h, c = carry
        gates = gin_ref[t] + jnp.dot(h, whh_f, preferred_element_type=jnp.float32)
        # full-width EUP transcendentals + one VPU select, then gate slices
        act = jnp.where(tanh_mask, jnp.tanh(gates), jax.nn.sigmoid(gates))
        i = act[:, 0 * H:1 * H]
        f = act[:, 1 * H:2 * H]
        g = act[:, 2 * H:3 * H]
        o = act[:, 3 * H:4 * H]
        c_new = f * c + i * g
        h_new = o * jnp.tanh(c_new)
        return h_new, c_new

    h_fwd, _ = lax.fori_loop(0, T, fwd_body, (h0, c0),
                             unroll=True if T <= 32 else 8)

    # ---- reverse-direction hidden state at t = T-1: one cell step from zero state,
    #      so the h @ W_hh contribution is exactly zero and is skipped ----
    x_last = h2[(T - 1) * TB:T * TB, :]                      # (TB, C2)
    gates_b = (jnp.dot(x_last, wih_b_ref[...], preferred_element_type=jnp.float32)
               + b_b_ref[...])
    act_b = jnp.where(tanh_mask, jnp.tanh(gates_b), jax.nn.sigmoid(gates_b))
    i_b = act_b[:, 0 * H:1 * H]
    g_b = act_b[:, 2 * H:3 * H]
    o_b = act_b[:, 3 * H:4 * H]
    c_b = i_b * g_b                                          # f_b * c0 == 0
    h_bwd = o_b * jnp.tanh(c_b)

    # ---- final Linear on [h_fwd | h_bwd]: two matmuls, no lane concat ----
    out_ref[...] = (jnp.dot(h_fwd, wfc_f_ref[...], preferred_element_type=jnp.float32)
                    + jnp.dot(h_bwd, wfc_b_ref[...], preferred_element_type=jnp.float32)
                    + bfc_ref[...])


def cnn_bilstm_forward(x, params):
    """x: (batch, seq, input_size) float32. Returns (batch, output_size)."""
    B, T, Cin = x.shape
    H = params["w_hh_f"].shape[1]
    out_dim = params["fc_w"].shape[0]

    # sublane-fill the batch dim and tile it over a parallel grid axis
    TB = min(_round_up(B, 8), 128)          # batch tile (multiple of 8 sublanes)
    Bp = _round_up(B, TB)
    n_tiles = Bp // TB

    # glue: layout / transposes / zero-padding only (all compute stays in the kernel)
    xt = jnp.transpose(x, (1, 0, 2)).astype(jnp.float32)        # (T, B, Cin)
    xp = jnp.pad(xt, ((1, 1), (0, Bp - B), (0, 0)))             # (T+2, Bp, Cin)
    w1 = jnp.transpose(params["conv1_w"], (2, 1, 0))            # (3, Cin, 64)
    b1 = params["conv1_b"].reshape(1, C1)
    w2 = jnp.transpose(params["conv2_w"], (2, 1, 0))            # (3, 64, 128)
    b2 = params["conv2_b"].reshape(1, C2)
    wih_f = params["w_ih_f"].T                                  # (128, 4H)
    whh_f = params["w_hh_f"].T                                  # (H, 4H)
    b_f = (params["b_ih_f"] + params["b_hh_f"]).reshape(1, 4 * H)
    wih_b = params["w_ih_b"].T                                  # (128, 4H)
    b_b = (params["b_ih_b"] + params["b_hh_b"]).reshape(1, 4 * H)
    wfc = params["fc_w"].T                                      # (2H, out)
    wfc_f = wfc[:H]                                             # (H, out)
    wfc_b = wfc[H:]                                             # (H, out)
    bfc = params["fc_b"].reshape(1, out_dim)

    # rough per-program VMEM estimate (f32, lane-padded) -> explicit scoped limit
    lane = lambda c: _round_up(c, 128)
    est = 4 * (
        2 * (T + 2) * TB * lane(Cin)                 # double-buffered input block
        + T * TB * (lane(C1) + lane(C2) + lane(4 * H)) * 2   # conv/gate intermediates
        + T * TB * lane(4 * H)                       # gin scratch
        + 3 * lane(Cin) * lane(C1) + 3 * lane(C1) * lane(C2)
        + 2 * lane(C2) * lane(4 * H) + lane(H) * lane(4 * H)
        + 2 * lane(H) * lane(out_dim) + 8 * lane(out_dim)
        + 2 * TB * lane(out_dim)
    )
    vmem_limit = int(min(64 * 1024 * 1024, max(32 * 1024 * 1024, 2 * est)))

    grid_spec = pltpu.PrefetchScalarGridSpec(
        num_scalar_prefetch=0,
        grid=(n_tiles,),
        in_specs=[
            pl.BlockSpec((T + 2, TB, Cin), lambda b: (0, b, 0)),   # xp (batch-tiled)
            pl.BlockSpec((3, Cin, C1), lambda b: (0, 0, 0)),       # w1
            pl.BlockSpec((1, C1), lambda b: (0, 0)),               # b1
            pl.BlockSpec((3, C1, C2), lambda b: (0, 0, 0)),        # w2
            pl.BlockSpec((1, C2), lambda b: (0, 0)),               # b2
            pl.BlockSpec((C2, 4 * H), lambda b: (0, 0)),           # wih_f
            pl.BlockSpec((H, 4 * H), lambda b: (0, 0)),            # whh_f
            pl.BlockSpec((1, 4 * H), lambda b: (0, 0)),            # b_f
            pl.BlockSpec((C2, 4 * H), lambda b: (0, 0)),           # wih_b
            pl.BlockSpec((1, 4 * H), lambda b: (0, 0)),            # b_b
            pl.BlockSpec((H, out_dim), lambda b: (0, 0)),          # wfc_f
            pl.BlockSpec((H, out_dim), lambda b: (0, 0)),          # wfc_b
            pl.BlockSpec((1, out_dim), lambda b: (0, 0)),          # bfc
        ],
        out_specs=pl.BlockSpec((TB, out_dim), lambda b: (b, 0)),
        scratch_shapes=[
            pltpu.VMEM((T, TB, 4 * H), jnp.float32),   # hoisted LSTM input projection
        ],
    )

    out = pl.pallas_call(
        cnn_bilstm_kernel,
        out_shape=jax.ShapeDtypeStruct((Bp, out_dim), jnp.float32),
        grid_spec=grid_spec,
        compiler_params=pltpu.CompilerParams(
            dimension_semantics=("parallel",),
            vmem_limit_bytes=vmem_limit,
        ),
    )(xp, w1, b1, w2, b2, wih_f, whh_f, b_f, wih_b, b_b, wfc_f, wfc_b, bfc)

    return out[:B]


# ------------------------- pure-JAX reference (PyTorch semantics) -------------------------
def ref_forward(x, params):
    def conv1d(x_ncl, w, b):
        y = lax.conv_general_dilated(x_ncl, w, window_strides=(1,), padding=((1, 1),),
                                     dimension_numbers=("NCH", "OIH", "NCH"))
        return y + b[None, :, None]

    xc = jnp.transpose(x, (0, 2, 1))                            # (B, Cin, T)
    h = jax.nn.relu(conv1d(xc, params["conv1_w"], params["conv1_b"]))
    h = jax.nn.relu(conv1d(h, params["conv2_w"], params["conv2_b"]))
    seq = jnp.transpose(h, (0, 2, 1))                           # (B, T, 128)
    B, T, _ = seq.shape
    H = params["w_hh_f"].shape[1]

    def cell(x_t, h_, c_, wih, whh, bih, bhh):
        g = x_t @ wih.T + h_ @ whh.T + bih + bhh
        i = jax.nn.sigmoid(g[:, :H]); f = jax.nn.sigmoid(g[:, H:2 * H])
        gg = jnp.tanh(g[:, 2 * H:3 * H]); o = jax.nn.sigmoid(g[:, 3 * H:])
        c_ = f * c_ + i * gg
        return o * jnp.tanh(c_), c_

    hf = jnp.zeros((B, H)); cf = jnp.zeros((B, H))
    for t in range(T):
        hf, cf = cell(seq[:, t], hf, cf, params["w_ih_f"], params["w_hh_f"],
                      params["b_ih_f"], params["b_hh_f"])
    hb, _ = cell(seq[:, T - 1], jnp.zeros((B, H)), jnp.zeros((B, H)),
                 params["w_ih_b"], params["w_hh_b"], params["b_ih_b"], params["b_hh_b"])
    feat = jnp.concatenate([hf, hb], axis=-1)
    return feat @ params["fc_w"].T + params["fc_b"]


def init_params(key, input_size, hidden_size, output_size):
    ks = jax.random.split(key, 16)
    s = 0.1
    H4 = 4 * hidden_size
    return {
        "conv1_w": s * jax.random.normal(ks[0], (C1, input_size, 3), jnp.float32),
        "conv1_b": s * jax.random.normal(ks[1], (C1,), jnp.float32),
        "conv2_w": s * jax.random.normal(ks[2], (C2, C1, 3), jnp.float32),
        "conv2_b": s * jax.random.normal(ks[3], (C2,), jnp.float32),
        "w_ih_f": s * jax.random.normal(ks[4], (H4, C2), jnp.float32),
        "w_hh_f": s * jax.random.normal(ks[5], (H4, hidden_size), jnp.float32),
        "b_ih_f": s * jax.random.normal(ks[6], (H4,), jnp.float32),
        "b_hh_f": s * jax.random.normal(ks[7], (H4,), jnp.float32),
        "w_ih_b": s * jax.random.normal(ks[8], (H4, C2), jnp.float32),
        "w_hh_b": s * jax.random.normal(ks[9], (H4, hidden_size), jnp.float32),
        "b_ih_b": s * jax.random.normal(ks[10], (H4,), jnp.float32),
        "b_hh_b": s * jax.random.normal(ks[11], (H4,), jnp.float32),
        "fc_w": s * jax.random.normal(ks[12], (output_size, 2 * hidden_size), jnp.float32),
        "fc_b": s * jax.random.normal(ks[13], (output_size,), jnp.float32),
    }


if __name__ == "__main__":
    B, T, INPUT_SIZE, HIDDEN, OUT = 2, 8, 8, 32, 4
    key = jax.random.PRNGKey(0)
    kx, kp = jax.random.split(key)
    x = jax.random.normal(kx, (B, T, INPUT_SIZE), jnp.float32)
    params = init_params(kp, INPUT_SIZE, HIDDEN, OUT)

    y = jax.block_until_ready(cnn_bilstm_forward(x, params))
    y_ref = jax.block_until_ready(ref_forward(x, params))

    assert y.shape == (B, OUT)
    assert jnp.allclose(y, y_ref, atol=2e-2, rtol=2e-2), (y, y_ref)
    print("KERNEL_OK")
</pallas_src>

<mosaic_0001>
module attributes {stable_mosaic.version = 11 : i64} {
  func.func @cnn_bilstm_kernel(%arg0: i32, %arg1: memref<10x8x8xf32, #tpu.memory_space<vmem>>, %arg2: memref<3x8x64xf32, #tpu.memory_space<vmem>>, %arg3: memref<1x64xf32, #tpu.memory_space<vmem>>, %arg4: memref<3x64x128xf32, #tpu.memory_space<vmem>>, %arg5: memref<1x128xf32, #tpu.memory_space<vmem>>, %arg6: memref<128x128xf32, #tpu.memory_space<vmem>>, %arg7: memref<32x128xf32, #tpu.memory_space<vmem>>, %arg8: memref<1x128xf32, #tpu.memory_space<vmem>>, %arg9: memref<128x128xf32, #tpu.memory_space<vmem>>, %arg10: memref<1x128xf32, #tpu.memory_space<vmem>>, %arg11: memref<32x4xf32, #tpu.memory_space<vmem>>, %arg12: memref<32x4xf32, #tpu.memory_space<vmem>>, %arg13: memref<1x4xf32, #tpu.memory_space<vmem>>, %arg14: memref<8x4xf32, #tpu.memory_space<vmem>>, %arg15: memref<8x8x128xf32, #tpu.memory_space<vmem>>) attributes {dimension_semantics = [#tpu.dimension_semantics<parallel>], iteration_bounds = array<i64: 1>, scalar_prefetch = 0 : i64, scratch_operands = 1 : i64, tpu.core_type = #tpu.core_type<tc>, window_params = [{transform_indices = @transform_0, window_bounds = array<i64: 10, 8, 8>}, {pipeline_mode = #tpu.pipeline_mode<synchronous>, transform_indices = @transform_1, window_bounds = array<i64: 3, 8, 64>}, {pipeline_mode = #tpu.pipeline_mode<synchronous>, transform_indices = @transform_2, window_bounds = array<i64: 1, 64>}, {pipeline_mode = #tpu.pipeline_mode<synchronous>, transform_indices = @transform_3, window_bounds = array<i64: 3, 64, 128>}, {pipeline_mode = #tpu.pipeline_mode<synchronous>, transform_indices = @transform_4, window_bounds = array<i64: 1, 128>}, {pipeline_mode = #tpu.pipeline_mode<synchronous>, transform_indices = @transform_5, window_bounds = array<i64: 128, 128>}, {pipeline_mode = #tpu.pipeline_mode<synchronous>, transform_indices = @transform_6, window_bounds = array<i64: 32, 128>}, {pipeline_mode = #tpu.pipeline_mode<synchronous>, transform_indices = @transform_7, window_bounds = array<i64: 1, 128>}, {pipeline_mode = #tpu.pipeline_mode<synchronous>, transform_indices = @transform_8, window_bounds = array<i64: 128, 128>}, {pipeline_mode = #tpu.pipeline_mode<synchronous>, transform_indices = @transform_9, window_bounds = array<i64: 1, 128>}, {pipeline_mode = #tpu.pipeline_mode<synchronous>, transform_indices = @transform_10, window_bounds = array<i64: 32, 4>}, {pipeline_mode = #tpu.pipeline_mode<synchronous>, transform_indices = @transform_11, window_bounds = array<i64: 32, 4>}, {pipeline_mode = #tpu.pipeline_mode<synchronous>, transform_indices = @transform_12, window_bounds = array<i64: 1, 4>}, {transform_indices = @transform_13, window_bounds = array<i64: 8, 4>}]} {
    %c0 = arith.constant 0 : index
    %c0_0 = arith.constant 0 : index
    %c0_1 = arith.constant 0 : index
    %0 = vector.load %arg1[%c0, %c0_0, %c0_1] : memref<10x8x8xf32, #tpu.memory_space<vmem>>, vector<10x8x8xf32>
    %1 = vector.shape_cast %0 : vector<10x8x8xf32> to vector<80x8xf32>
    %2 = vector.extract_strided_slice %1 {offsets = [0, 0], sizes = [64, 8], strides = [1, 1]} : vector<80x8xf32> to vector<64x8xf32>
    %c0_2 = arith.constant 0 : index
    %c0_3 = arith.constant 0 : index
    %c0_4 = arith.constant 0 : index
    %3 = vector.load %arg2[%c0_2, %c0_3, %c0_4] : memref<3x8x64xf32, #tpu.memory_space<vmem>>, vector<1x8x64xf32>
    %4 = vector.shape_cast %3 : vector<1x8x64xf32> to vector<8x64xf32>
    %cst = arith.constant dense<0.000000e+00> : vector<64x64xf32>
    %5 = tpu.matmul %2, %4, %cst {dimension_numbers = #tpu.dot_dimension_numbers<[1], [0], [0], [1], [0, 0, 1, 1], [], []>} : vector<64x8xf32>, vector<8x64xf32>, vector<64x64xf32> -> vector<64x64xf32>
    %6 = vector.extract_strided_slice %1 {offsets = [8, 0], sizes = [64, 8], strides = [1, 1]} : vector<80x8xf32> to vector<64x8xf32>
    %c1 = arith.constant 1 : index
    %c0_5 = arith.constant 0 : index
    %c0_6 = arith.constant 0 : index
    %7 = vector.load %arg2[%c1, %c0_5, %c0_6] : memref<3x8x64xf32, #tpu.memory_space<vmem>>, vector<1x8x64xf32>
    %8 = vector.shape_cast %7 : vector<1x8x64xf32> to vector<8x64xf32>
    %cst_7 = arith.constant dense<0.000000e+00> : vector<64x64xf32>
    %9 = tpu.matmul %6, %8, %cst_7 {dimension_numbers = #tpu.dot_dimension_numbers<[1], [0], [0], [1], [0, 0, 1, 1], [], []>} : vector<64x8xf32>, vector<8x64xf32>, vector<64x64xf32> -> vector<64x64xf32>
    %10 = arith.addf %5, %9 : vector<64x64xf32>
    %11 = vector.extract_strided_slice %1 {offsets = [16, 0], sizes = [64, 8], strides = [1, 1]} : vector<80x8xf32> to vector<64x8xf32>
    %c2 = arith.constant 2 : index
    %c0_8 = arith.constant 0 : index
    %c0_9 = arith.constant 0 : index
    %12 = vector.load %arg2[%c2, %c0_8, %c0_9] : memref<3x8x64xf32, #tpu.memory_space<vmem>>, vector<1x8x64xf32>
    %13 = vector.shape_cast %12 : vector<1x8x64xf32> to vector<8x64xf32>
    %cst_10 = arith.constant dense<0.000000e+00> : vector<64x64xf32>
    %14 = tpu.matmul %11, %13, %cst_10 {dimension_numbers = #tpu.dot_dimension_numbers<[1], [0], [0], [1], [0, 0, 1, 1], [], []>} : vector<64x8xf32>, vector<8x64xf32>, vector<64x64xf32> -> vector<64x64xf32>
    %15 = arith.addf %10, %14 : vector<64x64xf32>
    %c0_11 = arith.constant 0 : index
    %c0_12 = arith.constant 0 : index
    %16 = vector.load %arg3[%c0_11, %c0_12] : memref<1x64xf32, #tpu.memory_space<vmem>>, vector<1x64xf32>
    %17 = vector.broadcast %16 : vector<1x64xf32> to vector<64x64xf32>
    %18 = arith.addf %15, %17 : vector<64x64xf32>
    %cst_13 = arith.constant 0.000000e+00 : f32
    %19 = vector.broadcast %cst_13 : f32 to vector<64x64xf32>
    %20 = arith.maximumf %18, %19 : vector<64x64xf32>
    %cst_14 = arith.constant 0.000000e+00 : f32
    %21 = vector.broadcast %cst_14 : f32 to vector<8x64xf32>
    %22 = tpu.concatenate %21, %20, %21 in 0 : vector<8x64xf32>, vector<64x64xf32>, vector<8x64xf32> -> vector<80x64xf32>
    %23 = vector.extract_strided_slice %22 {offsets = [0, 0], sizes = [64, 64], strides = [1, 1]} : vector<80x64xf32> to vector<64x64xf32>
    %c0_15 = arith.constant 0 : index
    %c0_16 = arith.constant 0 : index
    %c0_17 = arith.constant 0 : index
    %24 = vector.load %arg4[%c0_15, %c0_16, %c0_17] : memref<3x64x128xf32, #tpu.memory_space<vmem>>, vector<1x64x128xf32>
    %25 = vector.shape_cast %24 : vector<1x64x128xf32> to vector<64x128xf32>
    %cst_18 = arith.constant dense<0.000000e+00> : vector<64x128xf32>
    %26 = tpu.matmul %23, %25, %cst_18 {dimension_numbers = #tpu.dot_dimension_numbers<[1], [0], [0], [1], [0, 0, 1, 1], [], []>} : vector<64x64xf32>, vector<64x128xf32>, vector<64x128xf32> -> vector<64x128xf32>
    %27 = vector.extract_strided_slice %22 {offsets = [8, 0], sizes = [64, 64], strides = [1, 1]} : vector<80x64xf32> to vector<64x64xf32>
    %c1_19 = arith.constant 1 : index
    %c0_20 = arith.constant 0 : index
    %c0_21 = arith.constant 0 : index
    %28 = vector.load %arg4[%c1_19, %c0_20, %c0_21] : memref<3x64x128xf32, #tpu.memory_space<vmem>>, vector<1x64x128xf32>
    %29 = vector.shape_cast %28 : vector<1x64x128xf32> to vector<64x128xf32>
    %cst_22 = arith.constant dense<0.000000e+00> : vector<64x128xf32>
    %30 = tpu.matmul %27, %29, %cst_22 {dimension_numbers = #tpu.dot_dimension_numbers<[1], [0], [0], [1], [0, 0, 1, 1], [], []>} : vector<64x64xf32>, vector<64x128xf32>, vector<64x128xf32> -> vector<64x128xf32>
    %31 = arith.addf %26, %30 : vector<64x128xf32>
    %32 = vector.extract_strided_slice %22 {offsets = [16, 0], sizes = [64, 64], strides = [1, 1]} : vector<80x64xf32> to vector<64x64xf32>
    %c2_23 = arith.constant 2 : index
    %c0_24 = arith.constant 0 : index
    %c0_25 = arith.constant 0 : index
    %33 = vector.load %arg4[%c2_23, %c0_24, %c0_25] : memref<3x64x128xf32, #tpu.memory_space<vmem>>, vector<1x64x128xf32>
    %34 = vector.shape_cast %33 : vector<1x64x128xf32> to vector<64x128xf32>
    %cst_26 = arith.constant dense<0.000000e+00> : vector<64x128xf32>
    %35 = tpu.matmul %32, %34, %cst_26 {dimension_numbers = #tpu.dot_dimension_numbers<[1], [0], [0], [1], [0, 0, 1, 1], [], []>} : vector<64x64xf32>, vector<64x128xf32>, vector<64x128xf32> -> vector<64x128xf32>
    %36 = arith.addf %31, %35 : vector<64x128xf32>
    %c0_27 = arith.constant 0 : index
    %c0_28 = arith.constant 0 : index
    %37 = vector.load %arg5[%c0_27, %c0_28] : memref<1x128xf32, #tpu.memory_space<vmem>>, vector<1x128xf32>
    %38 = vector.broadcast %37 : vector<1x128xf32> to vector<64x128xf32>
    %39 = arith.addf %36, %38 : vector<64x128xf32>
    %cst_29 = arith.constant 0.000000e+00 : f32
    %40 = vector.broadcast %cst_29 : f32 to vector<64x128xf32>
    %41 = arith.maximumf %39, %40 : vector<64x128xf32>
    %c0_30 = arith.constant 0 : index
    %c0_31 = arith.constant 0 : index
    %42 = vector.load %arg6[%c0_30, %c0_31] : memref<128x128xf32, #tpu.memory_space<vmem>>, vector<128x128xf32>
    %cst_32 = arith.constant dense<0.000000e+00> : vector<64x128xf32>
    %43 = tpu.matmul %41, %42, %cst_32 {dimension_numbers = #tpu.dot_dimension_numbers<[1], [0], [0], [1], [0, 0, 1, 1], [], []>} : vector<64x128xf32>, vector<128x128xf32>, vector<64x128xf32> -> vector<64x128xf32>
    %c0_33 = arith.constant 0 : index
    %c0_34 = arith.constant 0 : index
    %44 = vector.load %arg8[%c0_33, %c0_34] : memref<1x128xf32, #tpu.memory_space<vmem>>, vector<1x128xf32>
    %45 = vector.broadcast %44 : vector<1x128xf32> to vector<64x128xf32>
    %46 = arith.addf %43, %45 : vector<64x128xf32>
    %47 = vector.shape_cast %46 : vector<64x128xf32> to vector<8x8x128xf32>
    %c0_35 = arith.constant 0 : index
    %c0_36 = arith.constant 0 : index
    %c0_37 = arith.constant 0 : index
    %48 = vector.load %arg15[%c0_35, %c0_36, %c0_37] : memref<8x8x128xf32, #tpu.memory_space<vmem>>, vector<8x8x128xf32>
    tpu.vector_store %arg15[%c0_35, %c0_36, %c0_37], %47 {strides = array<i32>} : memref<8x8x128xf32, #tpu.memory_space<vmem>>, vector<8x8x128xf32>,
    %49 = tpu.iota {dimensions = array<i32: 1>} : vector<1x128xi32>
    %c64_i32 = arith.constant 64 : i32
    %50 = vector.broadcast %c64_i32 : i32 to vector<1x128xi32>
    %51 = arith.cmpi sge, %49, %50 : vector<1x128xi32>
    %c96_i32 = arith.constant 96 : i32
    %52 = vector.broadcast %c96_i32 : i32 to vector<1x128xi32>
    %53 = arith.cmpi slt, %49, %52 : vector<1x128xi32>
    %54 = arith.andi %51, %53 : vector<1x128xi1>
    %55 = vector.shape_cast %54 : vector<1x128xi1> to vector<1x128xi1>
    %56 = vector.broadcast %55 : vector<1x128xi1> to vector<8x128xi1>
    %c0_38 = arith.constant 0 : index
    %c0_39 = arith.constant 0 : index
    %57 = vector.load %arg7[%c0_38, %c0_39] : memref<32x128xf32, #tpu.memory_space<vmem>>, vector<32x128xf32>
    %cst_40 = arith.constant 0.000000e+00 : f32
    %58 = vector.broadcast %cst_40 : f32 to vector<8x32xf32>
    %cst_41 = arith.constant 0.000000e+00 : f32
    %59 = vector.broadcast %cst_41 : f32 to vector<8x32xf32>
    %c0_i32 = arith.constant 0 : i32
    %60 = arith.index_cast %c0_i32 : i32 to index
    %c0_42 = arith.constant 0 : index
    %c0_43 = arith.constant 0 : index
    %61 = vector.load %arg15[%60, %c0_42, %c0_43] : memref<8x8x128xf32, #tpu.memory_space<vmem>>, vector<1x8x128xf32>
    %62 = vector.shape_cast %61 : vector<1x8x128xf32> to vector<8x128xf32>
    %cst_44 = arith.constant dense<0.000000e+00> : vector<8x128xf32>
    %63 = tpu.matmul %58, %57, %cst_44 {dimension_numbers = #tpu.dot_dimension_numbers<[1], [0], [0], [1], [0, 0, 1, 1], [], []>} : vector<8x32xf32>, vector<32x128xf32>, vector<8x128xf32> -> vector<8x128xf32>
    %64 = arith.addf %62, %63 : vector<8x128xf32>
    %65 = math.tanh %64 : vector<8x128xf32>
    %66 = arith.negf %64 : vector<8x128xf32>
    %67 = math.exp %66 : vector<8x128xf32>
    %cst_45 = arith.constant 1.000000e+00 : f32
    %68 = vector.broadcast %cst_45 : f32 to vector<8x128xf32>
    %69 = arith.addf %68, %67 : vector<8x128xf32>
    %70 = arith.divf %68, %69 : vector<8x128xf32>
    %71 = arith.select %56, %65, %70 : vector<8x128xi1>, vector<8x128xf32>
    %72 = vector.extract_strided_slice %71 {offsets = [0, 0], sizes = [8, 32], strides = [1, 1]} : vector<8x128xf32> to vector<8x32xf32>
    %73 = vector.extract_strided_slice %71 {offsets = [0, 32], sizes = [8, 32], strides = [1, 1]} : vector<8x128xf32> to vector<8x32xf32>
    %74 = vector.extract_strided_slice %71 {offsets = [0, 64], sizes = [8, 32], strides = [1, 1]} : vector<8x128xf32> to vector<8x32xf32>
    %75 = vector.extract_strided_slice %71 {offsets = [0, 96], sizes = [8, 32], strides = [1, 1]} : vector<8x128xf32> to vector<8x32xf32>
    %76 = arith.mulf %73, %59 : vector<8x32xf32>
    %77 = arith.mulf %72, %74 : vector<8x32xf32>
    %78 = arith.addf %76, %77 : vector<8x32xf32>
    %79 = math.tanh %78 : vector<8x32xf32>
    %80 = arith.mulf %75, %79 : vector<8x32xf32>
    %c1_i32 = arith.constant 1 : i32
    %81 = arith.index_cast %c1_i32 : i32 to index
    %c0_46 = arith.constant 0 : index
    %c0_47 = arith.constant 0 : index
    %82 = vector.load %arg15[%81, %c0_46, %c0_47] : memref<8x8x128xf32, #tpu.memory_space<vmem>>, vector<1x8x128xf32>
    %83 = vector.shape_cast %82 : vector<1x8x128xf32> to vector<8x128xf32>
    %cst_48 = arith.constant dense<0.000000e+00> : vector<8x128xf32>
    %84 = tpu.matmul %80, %57, %cst_48 {dimension_numbers = #tpu.dot_dimension_numbers<[1], [0], [0], [1], [0, 0, 1, 1], [], []>} : vector<8x32xf32>, vector<32x128xf32>, vector<8x128xf32> -> vector<8x128xf32>
    %85 = arith.addf %83, %84 : vector<8x128xf32>
    %86 = math.tanh %85 : vector<8x128xf32>
    %87 = arith.negf %85 : vector<8x128xf32>
    %88 = math.exp %87 : vector<8x128xf32>
    %cst_49 = arith.constant 1.000000e+00 : f32
    %89 = vector.broadcast %cst_49 : f32 to vector<8x128xf32>
    %90 = arith.addf %89, %88 : vector<8x128xf32>
    %91 = arith.divf %89, %90 : vector<8x128xf32>
    %92 = arith.select %56, %86, %91 : vector<8x128xi1>, vector<8x128xf32>
    %93 = vector.extract_strided_slice %92 {offsets = [0, 0], sizes = [8, 32], strides = [1, 1]} : vector<8x128xf32> to vector<8x32xf32>
    %94 = vector.extract_strided_slice %92 {offsets = [0, 32], sizes = [8, 32], strides = [1, 1]} : vector<8x128xf32> to vector<8x32xf32>
    %95 = vector.extract_strided_slice %92 {offsets = [0, 64], sizes = [8, 32], strides = [1, 1]} : vector<8x128xf32> to vector<8x32xf32>
    %96 = vector.extract_strided_slice %92 {offsets = [0, 96], sizes = [8, 32], strides = [1, 1]} : vector<8x128xf32> to vector<8x32xf32>
    %97 = arith.mulf %94, %78 : vector<8x32xf32>
    %98 = arith.mulf %93, %95 : vector<8x32xf32>
    %99 = arith.addf %97, %98 : vector<8x32xf32>
    %100 = math.tanh %99 : vector<8x32xf32>
    %101 = arith.mulf %96, %100 : vector<8x32xf32>
    %c2_i32 = arith.constant 2 : i32
    %102 = arith.index_cast %c2_i32 : i32 to index
    %c0_50 = arith.constant 0 : index
    %c0_51 = arith.constant 0 : index
    %103 = vector.load %arg15[%102, %c0_50, %c0_51] : memref<8x8x128xf32, #tpu.memory_space<vmem>>, vector<1x8x128xf32>
    %104 = vector.shape_cast %103 : vector<1x8x128xf32> to vector<8x128xf32>
    %cst_52 = arith.constant dense<0.000000e+00> : vector<8x128xf32>
    %105 = tpu.matmul %101, %57, %cst_52 {dimension_numbers = #tpu.dot_dimension_numbers<[1], [0], [0], [1], [0, 0, 1, 1], [], []>} : vector<8x32xf32>, vector<32x128xf32>, vector<8x128xf32> -> vector<8x128xf32>
    %106 = arith.addf %104, %105 : vector<8x128xf32>
    %107 = math.tanh %106 : vector<8x128xf32>
    %108 = arith.negf %106 : vector<8x128xf32>
    %109 = math.exp %108 : vector<8x128xf32>
    %cst_53 = arith.constant 1.000000e+00 : f32
    %110 = vector.broadcast %cst_53 : f32 to vector<8x128xf32>
    %111 = arith.addf %110, %109 : vector<8x128xf32>
    %112 = arith.divf %110, %111 : vector<8x128xf32>
    %113 = arith.select %56, %107, %112 : vector<8x128xi1>, vector<8x128xf32>
    %114 = vector.extract_strided_slice %113 {offsets = [0, 0], sizes = [8, 32], strides = [1, 1]} : vector<8x128xf32> to vector<8x32xf32>
    %115 = vector.extract_strided_slice %113 {offsets = [0, 32], sizes = [8, 32], strides = [1, 1]} : vector<8x128xf32> to vector<8x32xf32>
    %116 = vector.extract_strided_slice %113 {offsets = [0, 64], sizes = [8, 32], strides = [1, 1]} : vector<8x128xf32> to vector<8x32xf32>
    %117 = vector.extract_strided_slice %113 {offsets = [0, 96], sizes = [8, 32], strides = [1, 1]} : vector<8x128xf32> to vector<8x32xf32>
    %118 = arith.mulf %115, %99 : vector<8x32xf32>
    %119 = arith.mulf %114, %116 : vector<8x32xf32>
    %120 = arith.addf %118, %119 : vector<8x32xf32>
    %121 = math.tanh %120 : vector<8x32xf32>
    %122 = arith.mulf %117, %121 : vector<8x32xf32>
    %c3_i32 = arith.constant 3 : i32
    %123 = arith.index_cast %c3_i32 : i32 to index
    %c0_54 = arith.constant 0 : index
    %c0_55 = arith.constant 0 : index
    %124 = vector.load %arg15[%123, %c0_54, %c0_55] : memref<8x8x128xf32, #tpu.memory_space<vmem>>, vector<1x8x128xf32>
    %125 = vector.shape_cast %124 : vector<1x8x128xf32> to vector<8x128xf32>
    %cst_56 = arith.constant dense<0.000000e+00> : vector<8x128xf32>
    %126 = tpu.matmul %122, %57, %cst_56 {dimension_numbers = #tpu.dot_dimension_numbers<[1], [0], [0], [1], [0, 0, 1, 1], [], []>} : vector<8x32xf32>, vector<32x128xf32>, vector<8x128xf32> -> vector<8x128xf32>
    %127 = arith.addf %125, %126 : vector<8x128xf32>
    %128 = math.tanh %127 : vector<8x128xf32>
    %129 = arith.negf %127 : vector<8x128xf32>
    %130 = math.exp %129 : vector<8x128xf32>
    %cst_57 = arith.constant 1.000000e+00 : f32
    %131 = vector.broadcast %cst_57 : f32 to vector<8x128xf32>
    %132 = arith.addf %131, %130 : vector<8x128xf32>
    %133 = arith.divf %131, %132 : vector<8x128xf32>
    %134 = arith.select %56, %128, %133 : vector<8x128xi1>, vector<8x128xf32>
    %135 = vector.extract_strided_slice %134 {offsets = [0, 0], sizes = [8, 32], strides = [1, 1]} : vector<8x128xf32> to vector<8x32xf32>
    %136 = vector.extract_strided_slice %134 {offsets = [0, 32], sizes = [8, 32], strides = [1, 1]} : vector<8x128xf32> to vector<8x32xf32>
    %137 = vector.extract_strided_slice %134 {offsets = [0, 64], sizes = [8, 32], strides = [1, 1]} : vector<8x128xf32> to vector<8x32xf32>
    %138 = vector.extract_strided_slice %134 {offsets = [0, 96], sizes = [8, 32], strides = [1, 1]} : vector<8x128xf32> to vector<8x32xf32>
    %139 = arith.mulf %136, %120 : vector<8x32xf32>
    %140 = arith.mulf %135, %137 : vector<8x32xf32>
    %141 = arith.addf %139, %140 : vector<8x32xf32>
    %142 = math.tanh %141 : vector<8x32xf32>
    %143 = arith.mulf %138, %142 : vector<8x32xf32>
    %c4_i32 = arith.constant 4 : i32
    %144 = arith.index_cast %c4_i32 : i32 to index
    %c0_58 = arith.constant 0 : index
    %c0_59 = arith.constant 0 : index
    %145 = vector.load %arg15[%144, %c0_58, %c0_59] : memref<8x8x128xf32, #tpu.memory_space<vmem>>, vector<1x8x128xf32>
    %146 = vector.shape_cast %145 : vector<1x8x128xf32> to vector<8x128xf32>
    %cst_60 = arith.constant dense<0.000000e+00> : vector<8x128xf32>
    %147 = tpu.matmul %143, %57, %cst_60 {dimension_numbers = #tpu.dot_dimension_numbers<[1], [0], [0], [1], [0, 0, 1, 1], [], []>} : vector<8x32xf32>, vector<32x128xf32>, vector<8x128xf32> -> vector<8x128xf32>
    %148 = arith.addf %146, %147 : vector<8x128xf32>
    %149 = math.tanh %148 : vector<8x128xf32>
    %150 = arith.negf %148 : vector<8x128xf32>
    %151 = math.exp %150 : vector<8x128xf32>
    %cst_61 = arith.constant 1.000000e+00 : f32
    %152 = vector.broadcast %cst_61 : f32 to vector<8x128xf32>
    %153 = arith.addf %152, %151 : vector<8x128xf32>
    %154 = arith.divf %152, %153 : vector<8x128xf32>
    %155 = arith.select %56, %149, %154 : vector<8x128xi1>, vector<8x128xf32>
    %156 = vector.extract_strided_slice %155 {offsets = [0, 0], sizes = [8, 32], strides = [1, 1]} : vector<8x128xf32> to vector<8x32xf32>
    %157 = vector.extract_strided_slice %155 {offsets = [0, 32], sizes = [8, 32], strides = [1, 1]} : vector<8x128xf32> to vector<8x32xf32>
    %158 = vector.extract_strided_slice %155 {offsets = [0, 64], sizes = [8, 32], strides = [1, 1]} : vector<8x128xf32> to vector<8x32xf32>
    %159 = vector.extract_strided_slice %155 {offsets = [0, 96], sizes = [8, 32], strides = [1, 1]} : vector<8x128xf32> to vector<8x32xf32>
    %160 = arith.mulf %157, %141 : vector<8x32xf32>
    %161 = arith.mulf %156, %158 : vector<8x32xf32>
    %162 = arith.addf %160, %161 : vector<8x32xf32>
    %163 = math.tanh %162 : vector<8x32xf32>
    %164 = arith.mulf %159, %163 : vector<8x32xf32>
    %c5_i32 = arith.constant 5 : i32
    %165 = arith.index_cast %c5_i32 : i32 to index
    %c0_62 = arith.constant 0 : index
    %c0_63 = arith.constant 0 : index
    %166 = vector.load %arg15[%165, %c0_62, %c0_63] : memref<8x8x128xf32, #tpu.memory_space<vmem>>, vector<1x8x128xf32>
    %167 = vector.shape_cast %166 : vector<1x8x128xf32> to vector<8x128xf32>
    %cst_64 = arith.constant dense<0.000000e+00> : vector<8x128xf32>
    %168 = tpu.matmul %164, %57, %cst_64 {dimension_numbers = #tpu.dot_dimension_numbers<[1], [0], [0], [1], [0, 0, 1, 1], [], []>} : vector<8x32xf32>, vector<32x128xf32>, vector<8x128xf32> -> vector<8x128xf32>
    %169 = arith.addf %167, %168 : vector<8x128xf32>
    %170 = math.tanh %169 : vector<8x128xf32>
    %171 = arith.negf %169 : vector<8x128xf32>
    %172 = math.exp %171 : vector<8x128xf32>
    %cst_65 = arith.constant 1.000000e+00 : f32
    %173 = vector.broadcast %cst_65 : f32 to vector<8x128xf32>
    %174 = arith.addf %173, %172 : vector<8x128xf32>
    %175 = arith.divf %173, %174 : vector<8x128xf32>
    %176 = arith.select %56, %170, %175 : vector<8x128xi1>, vector<8x128xf32>
    %177 = vector.extract_strided_slice %176 {offsets = [0, 0], sizes = [8, 32], strides = [1, 1]} : vector<8x128xf32> to vector<8x32xf32>
    %178 = vector.extract_strided_slice %176 {offsets = [0, 32], sizes = [8, 32], strides = [1, 1]} : vector<8x128xf32> to vector<8x32xf32>
    %179 = vector.extract_strided_slice %176 {offsets = [0, 64], sizes = [8, 32], strides = [1, 1]} : vector<8x128xf32> to vector<8x32xf32>
    %180 = vector.extract_strided_slice %176 {offsets = [0, 96], sizes = [8, 32], strides = [1, 1]} : vector<8x128xf32> to vector<8x32xf32>
    %181 = arith.mulf %178, %162 : vector<8x32xf32>
    %182 = arith.mulf %177, %179 : vector<8x32xf32>
    %183 = arith.addf %181, %182 : vector<8x32xf32>
    %184 = math.tanh %183 : vector<8x32xf32>
    %185 = arith.mulf %180, %184 : vector<8x32xf32>
    %c6_i32 = arith.constant 6 : i32
    %186 = arith.index_cast %c6_i32 : i32 to index
    %c0_66 = arith.constant 0 : index
    %c0_67 = arith.constant 0 : index
    %187 = vector.load %arg15[%186, %c0_66, %c0_67] : memref<8x8x128xf32, #tpu.memory_space<vmem>>, vector<1x8x128xf32>
    %188 = vector.shape_cast %187 : vector<1x8x128xf32> to vector<8x128xf32>
    %cst_68 = arith.constant dense<0.000000e+00> : vector<8x128xf32>
    %189 = tpu.matmul %185, %57, %cst_68 {dimension_numbers = #tpu.dot_dimension_numbers<[1], [0], [0], [1], [0, 0, 1, 1], [], []>} : vector<8x32xf32>, vector<32x128xf32>, vector<8x128xf32> -> vector<8x128xf32>
    %190 = arith.addf %188, %189 : vector<8x128xf32>
    %191 = math.tanh %190 : vector<8x128xf32>
    %192 = arith.negf %190 : vector<8x128xf32>
    %193 = math.exp %192 : vector<8x128xf32>
    %cst_69 = arith.constant 1.000000e+00 : f32
    %194 = vector.broadcast %cst_69 : f32 to vector<8x128xf32>
    %195 = arith.addf %194, %193 : vector<8x128xf32>
    %196 = arith.divf %194, %195 : vector<8x128xf32>
    %197 = arith.select %56, %191, %196 : vector<8x128xi1>, vector<8x128xf32>
    %198 = vector.extract_strided_slice %197 {offsets = [0, 0], sizes = [8, 32], strides = [1, 1]} : vector<8x128xf32> to vector<8x32xf32>
    %199 = vector.extract_strided_slice %197 {offsets = [0, 32], sizes = [8, 32], strides = [1, 1]} : vector<8x128xf32> to vector<8x32xf32>
    %200 = vector.extract_strided_slice %197 {offsets = [0, 64], sizes = [8, 32], strides = [1, 1]} : vector<8x128xf32> to vector<8x32xf32>
    %201 = vector.extract_strided_slice %197 {offsets = [0, 96], sizes = [8, 32], strides = [1, 1]} : vector<8x128xf32> to vector<8x32xf32>
    %202 = arith.mulf %199, %183 : vector<8x32xf32>
    %203 = arith.mulf %198, %200 : vector<8x32xf32>
    %204 = arith.addf %202, %203 : vector<8x32xf32>
    %205 = math.tanh %204 : vector<8x32xf32>
    %206 = arith.mulf %201, %205 : vector<8x32xf32>
    %c7_i32 = arith.constant 7 : i32
    %207 = arith.index_cast %c7_i32 : i32 to index
    %c0_70 = arith.constant 0 : index
    %c0_71 = arith.constant 0 : index
    %208 = vector.load %arg15[%207, %c0_70, %c0_71] : memref<8x8x128xf32, #tpu.memory_space<vmem>>, vector<1x8x128xf32>
    %209 = vector.shape_cast %208 : vector<1x8x128xf32> to vector<8x128xf32>
    %cst_72 = arith.constant dense<0.000000e+00> : vector<8x128xf32>
    %210 = tpu.matmul %206, %57, %cst_72 {dimension_numbers = #tpu.dot_dimension_numbers<[1], [0], [0], [1], [0, 0, 1, 1], [], []>} : vector<8x32xf32>, vector<32x128xf32>, vector<8x128xf32> -> vector<8x128xf32>
    %211 = arith.addf %209, %210 : vector<8x128xf32>
    %212 = math.tanh %211 : vector<8x128xf32>
    %213 = arith.negf %211 : vector<8x128xf32>
    %214 = math.exp %213 : vector<8x128xf32>
    %cst_73 = arith.constant 1.000000e+00 : f32
    %215 = vector.broadcast %cst_73 : f32 to vector<8x128xf32>
    %216 = arith.addf %215, %214 : vector<8x128xf32>
    %217 = arith.divf %215, %216 : vector<8x128xf32>
    %218 = arith.select %56, %212, %217 : vector<8x128xi1>, vector<8x128xf32>
    %219 = vector.extract_strided_slice %218 {offsets = [0, 0], sizes = [8, 32], strides = [1, 1]} : vector<8x128xf32> to vector<8x32xf32>
    %220 = vector.extract_strided_slice %218 {offsets = [0, 32], sizes = [8, 32], strides = [1, 1]} : vector<8x128xf32> to vector<8x32xf32>
    %221 = vector.extract_strided_slice %218 {offsets = [0, 64], sizes = [8, 32], strides = [1, 1]} : vector<8x128xf32> to vector<8x32xf32>
    %222 = vector.extract_strided_slice %218 {offsets = [0, 96], sizes = [8, 32], strides = [1, 1]} : vector<8x128xf32> to vector<8x32xf32>
    %223 = arith.mulf %220, %204 : vector<8x32xf32>
    %224 = arith.mulf %219, %221 : vector<8x32xf32>
    %225 = arith.addf %223, %224 : vector<8x32xf32>
    %226 = math.tanh %225 : vector<8x32xf32>
    %227 = arith.mulf %222, %226 : vector<8x32xf32>
    %c8_i32 = arith.constant 8 : i32
    %228 = vector.extract_strided_slice %41 {offsets = [56, 0], sizes = [8, 128], strides = [1, 1]} : vector<64x128xf32> to vector<8x128xf32>
    %c0_74 = arith.constant 0 : index
    %c0_75 = arith.constant 0 : index
    %229 = vector.load %arg9[%c0_74, %c0_75] : memref<128x128xf32, #tpu.memory_space<vmem>>, vector<128x128xf32>
    %cst_76 = arith.constant dense<0.000000e+00> : vector<8x128xf32>
    %230 = tpu.matmul %228, %229, %cst_76 {dimension_numbers = #tpu.dot_dimension_numbers<[1], [0], [0], [1], [0, 0, 1, 1], [], []>} : vector<8x128xf32>, vector<128x128xf32>, vector<8x128xf32> -> vector<8x128xf32>
    %c0_77 = arith.constant 0 : index
    %c0_78 = arith.constant 0 : index
    %231 = vector.load %arg10[%c0_77, %c0_78] : memref<1x128xf32, #tpu.memory_space<vmem>>, vector<1x128xf32>
    %232 = vector.broadcast %231 : vector<1x128xf32> to vector<8x128xf32>
    %233 = arith.addf %230, %232 : vector<8x128xf32>
    %234 = math.tanh %233 : vector<8x128xf32>
    %235 = arith.negf %233 : vector<8x128xf32>
    %236 = math.exp %235 : vector<8x128xf32>
    %cst_79 = arith.constant 1.000000e+00 : f32
    %237 = vector.broadcast %cst_79 : f32 to vector<8x128xf32>
    %238 = arith.addf %237, %236 : vector<8x128xf32>
    %239 = arith.divf %237, %238 : vector<8x128xf32>
    %240 = arith.select %56, %234, %239 : vector<8x128xi1>, vector<8x128xf32>
    %241 = vector.extract_strided_slice %240 {offsets = [0, 0], sizes = [8, 32], strides = [1, 1]} : vector<8x128xf32> to vector<8x32xf32>
    %242 = vector.extract_strided_slice %240 {offsets = [0, 64], sizes = [8, 32], strides = [1, 1]} : vector<8x128xf32> to vector<8x32xf32>
    %243 = vector.extract_strided_slice %240 {offsets = [0, 96], sizes = [8, 32], strides = [1, 1]} : vector<8x128xf32> to vector<8x32xf32>
    %244 = arith.mulf %241, %242 : vector<8x32xf32>
    %245 = math.tanh %244 : vector<8x32xf32>
    %246 = arith.mulf %243, %245 : vector<8x32xf32>
    %c0_80 = arith.constant 0 : index
    %c0_81 = arith.constant 0 : index
    %247 = vector.load %arg11[%c0_80, %c0_81] : memref<32x4xf32, #tpu.memory_space<vmem>>, vector<32x4xf32>
    %cst_82 = arith.constant dense<0.000000e+00> : vector<8x4xf32>
    %248 = tpu.matmul %227, %247, %cst_82 {dimension_numbers = #tpu.dot_dimension_numbers<[1], [0], [0], [1], [0, 0, 1, 1], [], []>} : vector<8x32xf32>, vector<32x4xf32>, vector<8x4xf32> -> vector<8x4xf32>
    %c0_83 = arith.constant 0 : index
    %c0_84 = arith.constant 0 : index
    %249 = vector.load %arg12[%c0_83, %c0_84] : memref<32x4xf32, #tpu.memory_space<vmem>>, vector<32x4xf32>
    %cst_85 = arith.constant dense<0.000000e+00> : vector<8x4xf32>
    %250 = tpu.matmul %246, %249, %cst_85 {dimension_numbers = #tpu.dot_dimension_numbers<[1], [0], [0], [1], [0, 0, 1, 1], [], []>} : vector<8x32xf32>, vector<32x4xf32>, vector<8x4xf32> -> vector<8x4xf32>
    %251 = arith.addf %248, %250 : vector<8x4xf32>
    %c0_86 = arith.constant 0 : index
    %c0_87 = arith.constant 0 : index
    %252 = vector.load %arg13[%c0_86, %c0_87] : memref<1x4xf32, #tpu.memory_space<vmem>>, vector<1x4xf32>
    %253 = vector.broadcast %252 : vector<1x4xf32> to vector<8x4xf32>
    %254 = arith.addf %251, %253 : vector<8x4xf32>
    %c0_88 = arith.constant 0 : index
    %c0_89 = arith.constant 0 : index
    %255 = vector.load %arg14[%c0_88, %c0_89] : memref<8x4xf32, #tpu.memory_space<vmem>>, vector<8x4xf32>
    tpu.vector_store %arg14[%c0_88, %c0_89], %254 {strides = array<i32>} : memref<8x4xf32, #tpu.memory_space<vmem>>, vector<8x4xf32>,
    return
  }
  func.func @transform_0(%arg0: i32) -> (i32, i32, i32) {
    %c0_i32 = arith.constant 0 : i32
    %c0_i32_0 = arith.constant 0 : i32
    %c0_i32_1 = arith.constant 0 : i32
    return %c0_i32, %arg0, %c0_i32_0 : i32, i32, i32
  }
  func.func @transform_1(%arg0: i32) -> (i32, i32, i32) {
    %c0_i32 = arith.constant 0 : i32
    %c0_i32_0 = arith.constant 0 : i32
    %c0_i32_1 = arith.constant 0 : i32
    %c0_i32_2 = arith.constant 0 : i32
    return %c0_i32, %c0_i32_0, %c0_i32_1 : i32, i32, i32
  }
  func.func @transform_2(%arg0: i32) -> (i32, i32) {
    %c0_i32 = arith.constant 0 : i32
    %c0_i32_0 = arith.constant 0 : i32
    %c0_i32_1 = arith.constant 0 : i32
    return %c0_i32, %c0_i32_0 : i32, i32
  }
  func.func @transform_3(%arg0: i32) -> (i32, i32, i32) {
    %c0_i32 = arith.constant 0 : i32
    %c0_i32_0 = arith.constant 0 : i32
    %c0_i32_1 = arith.constant 0 : i32
    %c0_i32_2 = arith.constant 0 : i32
    return %c0_i32, %c0_i32_0, %c0_i32_1 : i32, i32, i32
  }
  func.func @transform_4(%arg0: i32) -> (i32, i32) {
    %c0_i32 = arith.constant 0 : i32
    %c0_i32_0 = arith.constant 0 : i32
    %c0_i32_1 = arith.constant 0 : i32
    return %c0_i32, %c0_i32_0 : i32, i32
  }
  func.func @transform_5(%arg0: i32) -> (i32, i32) {
    %c0_i32 = arith.constant 0 : i32
    %c0_i32_0 = arith.constant 0 : i32
    %c0_i32_1 = arith.constant 0 : i32
    return %c0_i32, %c0_i32_0 : i32, i32
  }
  func.func @transform_6(%arg0: i32) -> (i32, i32) {
    %c0_i32 = arith.constant 0 : i32
    %c0_i32_0 = arith.constant 0 : i32
    %c0_i32_1 = arith.constant 0 : i32
    return %c0_i32, %c0_i32_0 : i32, i32
  }
  func.func @transform_7(%arg0: i32) -> (i32, i32) {
    %c0_i32 = arith.constant 0 : i32
    %c0_i32_0 = arith.constant 0 : i32
    %c0_i32_1 = arith.constant 0 : i32
    return %c0_i32, %c0_i32_0 : i32, i32
  }
  func.func @transform_8(%arg0: i32) -> (i32, i32) {
    %c0_i32 = arith.constant 0 : i32
    %c0_i32_0 = arith.constant 0 : i32
    %c0_i32_1 = arith.constant 0 : i32
    return %c0_i32, %c0_i32_0 : i32, i32
  }
  func.func @transform_9(%arg0: i32) -> (i32, i32) {
    %c0_i32 = arith.constant 0 : i32
    %c0_i32_0 = arith.constant 0 : i32
    %c0_i32_1 = arith.constant 0 : i32
    return %c0_i32, %c0_i32_0 : i32, i32
  }
  func.func @transform_10(%arg0: i32) -> (i32, i32) {
    %c0_i32 = arith.constant 0 : i32
    %c0_i32_0 = arith.constant 0 : i32
    %c0_i32_1 = arith.constant 0 : i32
    return %c0_i32, %c0_i32_0 : i32, i32
  }
  func.func @transform_11(%arg0: i32) -> (i32, i32) {
    %c0_i32 = arith.constant 0 : i32
    %c0_i32_0 = arith.constant 0 : i32
    %c0_i32_1 = arith.constant 0 : i32
    return %c0_i32, %c0_i32_0 : i32, i32
  }
  func.func @transform_12(%arg0: i32) -> (i32, i32) {
    %c0_i32 = arith.constant 0 : i32
    %c0_i32_0 = arith.constant 0 : i32
    %c0_i32_1 = arith.constant 0 : i32
    return %c0_i32, %c0_i32_0 : i32, i32
  }
  func.func @transform_13(%arg0: i32) -> (i32, i32) {
    %c0_i32 = arith.constant 0 : i32
    %c0_i32_0 = arith.constant 0 : i32
    return %arg0, %c0_i32 : i32, i32
  }
}

</mosaic_0001>

<llo_original>
// kernel: tpu_custom_call.1
$region0: #{tpu_custom_call.1}
  #allocation0 [shape = 'u32[]', space=smem, size = 0x4, offset = 0x4, fixed_abs, tag = 'smem constant byte address 0x4 - core index']
  #allocation1 [shape = 'u32[144,128]{1,0:T(1,128)}', space=vmem, size = 0x12000, scoped, tag = 'internal scratch']
  #allocation2 [shape = 'f32[8,8,128]{2,1,0:T(8,128)}', space=vmem, size = 0x8000, scoped, tag = 'scratch operand']
  %s0 = inlined_call_operand.vmem [shape: f32[10,8,8], index: 0, kind: input, shape index: {}]
  %s1 = inlined_call_operand.hbm [shape: f32[3,8,64], index: 1, kind: input, shape index: {}]
  %s2 = inlined_call_operand.vmem [shape: f32[1,64], index: 2, kind: input, shape index: {}]
  %s3 = inlined_call_operand.vmem [shape: f32[3,64,128], index: 3, kind: input, shape index: {}]
  %s4 = inlined_call_operand.vmem [shape: f32[1,128], index: 4, kind: input, shape index: {}]
  %s5 = inlined_call_operand.hbm [shape: f32[128,128], index: 5, kind: input, shape index: {}]
  %s6 = inlined_call_operand.vmem [shape: f32[32,128], index: 6, kind: input, shape index: {}]
  %s7 = inlined_call_operand.vmem [shape: f32[1,128], index: 7, kind: input, shape index: {}]
  %s8 = inlined_call_operand.hbm [shape: f32[128,128], index: 8, kind: input, shape index: {}]
  %s9 = inlined_call_operand.vmem [shape: f32[1,128], index: 9, kind: input, shape index: {}]
  %s10 = inlined_call_operand.vmem [shape: f32[32,4], index: 10, kind: input, shape index: {}]
  %s11 = inlined_call_operand.vmem [shape: f32[32,4], index: 11, kind: input, shape index: {}]
  %s12 = inlined_call_operand.vmem [shape: f32[1,4], index: 12, kind: input, shape index: {}]
  %s13 = inlined_call_operand.vmem [shape: f32[8,4], index: 13, kind: output, shape index: {}]
  %s14 = sld [smem:[#allocation0]]
  $region74: #{tpu_custom_call.1} parent=0
    _
  %s16 = ssub.s32 1, %s14
  %s17 = scalar_select 0, %s16, %s14
  $region1: #{tpu_custom_call.1} parent=0
    #allocation3 [shape = 'u8[12288]{0}', space=vmem, size = 0x3000, scoped, tag = 'input window, operand 1, single buffered']
    #allocation4 [shape = 's32[1]{0}', space=sflag, size = 0x4, scoped, tag = 'scoped memory for tpu_custom_call.1']
    #allocation5 [shape = 'u8[65536]{0}', space=vmem, size = 0x10000, scoped, tag = 'input window, operand 5, single buffered']
    #allocation6 [shape = 's32[1]{0}', space=sflag, size = 0x4, scoped, tag = 'scoped memory for tpu_custom_call.1']
    #allocation7 [shape = 'u8[65536]{0}', space=vmem, size = 0x10000, scoped, tag = 'input window, operand 8, single buffered']
    %18 = vsyncpa [#allocation4], 0
    %19 = vsyncpa [#allocation6], 0
    // Predicated region
    $region2: #{tpu_custom_call.1} parent=1 // pred_check
      _
    $region3: #{tpu_custom_call.1} parent=1 // pred_check_branch
      %21 = sbr.rel (0) target = $region5
    $region4: #{tpu_custom_call.1} parent=1 // pred_region
      _
    $region5: #{tpu_custom_call.1} parent=1 // pred_fallthru
      _
    // Predicated region
    $region6: #{tpu_custom_call.1} parent=1 // pred_check
      _
    $region7: #{tpu_custom_call.1} parent=1 // pred_check_branch
      %23 = sbr.rel (0) target = $region9
    $region8: #{tpu_custom_call.1} parent=1 // pred_region
      %s25 = ssub.s32 384, 384
      %26 = vsyncadd [#allocation4], %s25
      %s27 = sshll.u32 [#allocation3], 4
      %s28 = int_to_ptr.vmem [resolvable:$true] %s27
      %33 = dma.hbm_to_vmem [thread:$0]  %s1, 384, %s28, [#allocation4], 128, 128, 8
    $region9: #{tpu_custom_call.1} parent=1 // pred_fallthru
      _
    // Predicated region
    $region10: #{tpu_custom_call.1} parent=1 // pred_check
      _
    $region11: #{tpu_custom_call.1} parent=1 // pred_check_branch
      %35 = sbr.rel (0) target = $region13
    $region12: #{tpu_custom_call.1} parent=1 // pred_region
      _
    $region13: #{tpu_custom_call.1} parent=1 // pred_fallthru
      _
    // Predicated region
    $region14: #{tpu_custom_call.1} parent=1 // pred_check
      _
    $region15: #{tpu_custom_call.1} parent=1 // pred_check_branch
      %37 = sbr.rel (0) target = $region17
    $region16: #{tpu_custom_call.1} parent=1 // pred_region
      _
    $region17: #{tpu_custom_call.1} parent=1 // pred_fallthru
      _
    // Predicated region
    $region18: #{tpu_custom_call.1} parent=1 // pred_check
      _
    $region19: #{tpu_custom_call.1} parent=1 // pred_check_branch
      %39 = sbr.rel (0) target = $region21
    $region20: #{tpu_custom_call.1} parent=1 // pred_region
      _
    $region21: #{tpu_custom_call.1} parent=1 // pred_fallthru
      _
    // Predicated region
    $region22: #{tpu_custom_call.1} parent=1 // pred_check
      _
    $region23: #{tpu_custom_call.1} parent=1 // pred_check_branch
      %41 = sbr.rel (0) target = $region25
    $region24: #{tpu_custom_call.1} parent=1 // pred_region
      %s43 = ssub.s32 2048, 2048
      %44 = vsyncadd [#allocation6], %s43
      %s45 = sshll.u32 [#allocation5], 4
      %s46 = int_to_ptr.vmem [resolvable:$true] %s45
      %51 = dma.hbm_to_vmem [thread:$0]  %s5, 2048, %s46, [#allocation6], 128, 128, 8
    $region25: #{tpu_custom_call.1} parent=1 // pred_fallthru
      _
    // Predicated region
    $region26: #{tpu_custom_call.1} parent=1 // pred_check
      _
    $region27: #{tpu_custom_call.1} parent=1 // pred_check_branch
      %53 = sbr.rel (0) target = $region29
    $region28: #{tpu_custom_call.1} parent=1 // pred_region
      _
    $region29: #{tpu_custom_call.1} parent=1 // pred_fallthru
      _
    // Predicated region
    $region30: #{tpu_custom_call.1} parent=1 // pred_check
      _
    $region31: #{tpu_custom_call.1} parent=1 // pred_check_branch
      %55 = sbr.rel (0) target = $region33
    $region32: #{tpu_custom_call.1} parent=1 // pred_region
      _
    $region33: #{tpu_custom_call.1} parent=1 // pred_fallthru
      _
    // Predicated region
    $region34: #{tpu_custom_call.1} parent=1 // pred_check
      _
    $region35: #{tpu_custom_call.1} parent=1 // pred_check_branch
      %57 = sbr.rel (0) target = $region37
    $region36: #{tpu_custom_call.1} parent=1 // pred_region
      %s59 = ssub.s32 2048, 2048
      %60 = vsyncadd [#allocation6], %s59
      %s61 = sshll.u32 [#allocation7], 4
      %s62 = int_to_ptr.vmem [resolvable:$true] %s61
      %67 = dma.hbm_to_vmem [thread:$0]  %s8, 2048, %s62, [#allocation6], 128, 128, 8
    $region37: #{tpu_custom_call.1} parent=1 // pred_fallthru
      _
    // Predicated region
    $region38: #{tpu_custom_call.1} parent=1 // pred_check
      _
    $region39: #{tpu_custom_call.1} parent=1 // pred_check_branch
      %69 = sbr.rel (0) target = $region41
    $region40: #{tpu_custom_call.1} parent=1 // pred_region
      _
    $region41: #{tpu_custom_call.1} parent=1 // pred_fallthru
      _
    // Predicated region
    $region42: #{tpu_custom_call.1} parent=1 // pred_check
      _
    $region43: #{tpu_custom_call.1} parent=1 // pred_check_branch
      %71 = sbr.rel (0) target = $region45
    $region44: #{tpu_custom_call.1} parent=1 // pred_region
      _
    $region45: #{tpu_custom_call.1} parent=1 // pred_fallthru
      _
    // Predicated region
    $region46: #{tpu_custom_call.1} parent=1 // pred_check
      _
    $region47: #{tpu_custom_call.1} parent=1 // pred_check_branch
      %73 = sbr.rel (0) target = $region49
    $region48: #{tpu_custom_call.1} parent=1 // pred_region
      _
    $region49: #{tpu_custom_call.1} parent=1 // pred_fallthru
      _
    // Predicated region
    $region50: #{tpu_custom_call.1} parent=1 // pred_check
      _
    $region51: #{tpu_custom_call.1} parent=1 // pred_check_branch
      %75 = sbr.rel (0) target = $region53
    $region52: #{tpu_custom_call.1} parent=1 // pred_region
      _
    $region53: #{tpu_custom_call.1} parent=1 // pred_fallthru
      _
    // Predicated region
    $region54: #{tpu_custom_call.1} parent=1 // pred_check
      _
    $region55: #{tpu_custom_call.1} parent=1 // pred_check_branch
      %77 = sbr.rel (0) target = $region57
    $region56: #{tpu_custom_call.1} parent=1 // pred_region
      %78 = dma.done [#allocation4], 384
    $region57: #{tpu_custom_call.1} parent=1 // pred_fallthru
      _
    // Predicated region
    $region58: #{tpu_custom_call.1} parent=1 // pred_check
      _
    $region59: #{tpu_custom_call.1} parent=1 // pred_check_branch
      %80 = sbr.rel (0) target = $region61
    $region60: #{tpu_custom_call.1} parent=1 // pred_region
      %81 = dma.done [#allocation6], 2048
    $region61: #{tpu_custom_call.1} parent=1 // pred_fallthru
      _
    // Predicated region
    $region62: #{tpu_custom_call.1} parent=1 // pred_check
      _
    $region63: #{tpu_custom_call.1} parent=1 // pred_check_branch
      %83 = sbr.rel (0) target = $region65
    $region64: #{tpu_custom_call.1} parent=1 // pred_region
      %84 = dma.done [#allocation6], 2048
    $region65: #{tpu_custom_call.1} parent=1 // pred_fallthru
      _
    %v85 = vld [vmem:[%s0] sm:$0xff]
    %v86 = vld [vmem:[%s0 + $0x8] sm:$0xff]
    %v87 = vld [vmem:[%s0 + $0x10] sm:$0xff]
    %v88 = vld [vmem:[%s0 + $0x18] sm:$0xff]
    %v89 = vld [vmem:[%s0 + $0x20] sm:$0xff]
    %v90 = vld [vmem:[%s0 + $0x28] sm:$0xff]
    %v91 = vld [vmem:[%s0 + $0x30] sm:$0xff]
    %v92 = vld [vmem:[%s0 + $0x38] sm:$0xff]
    %v93 = vld [vmem:[%s0 + $0x40] sm:$0xff]
    %v94 = vld [vmem:[%s0 + $0x48] sm:$0xff]
    %v95 = vld [vmem:[#allocation3] sm:$0xff]
    %s96 = scalar_lea.vmem [#allocation3], 8
    %v97 = vld [vmem:[%s96] sm:$0xff]
    %vm98 = vcmask 64512
    %v100 = vsel %vm98, %v86, 0
    %v103 = vsel %vm98, %v87, 0
    %v106 = vsel %vm98, %v88, 0
    %v109 = vsel %vm98, %v89, 0
    %v112 = vsel %vm98, %v90, 0
    %v115 = vsel %vm98, %v91, 0
    %v118 = vsel %vm98, %v92, 0
    %v121 = vsel %vm98, %v93, 0
    %123 = vmatprep.subr.mxu0 0.0
    %124 = vmatpush1.msra.mxu0 %v97
    %125 = vmatprep.subr.mxu0 0.0
    %126 = vmatpush1.msra.mxu0 0.0
    %127 = vmatprep.subr.mxu0 0.0
    %128 = vmatpush1.msra.mxu0 0.0
    %129 = vmatprep.subr.mxu0 0.0
    %130 = vmatpush1.msra.mxu0 0.0
    %131 = vmatprep.subr.mxu0 0.0
    %132 = vmatpush1.msra.mxu0 0.0
    %133 = vmatprep.subr.mxu0 0.0
    %134 = vmatpush1.msra.mxu0 0.0
    %135 = vmatprep.subr.mxu0 0.0
    %136 = vmatpush1.msra.mxu0 0.0
    %137 = vmatprep.subr.mxu0 0.0
    %138 = vmatpush1.msra.mxu0 0.0
    %139 = vmatprep.subr.mxu0 0.0
    %140 = vmatpush1.msra.mxu0 0.0
    %141 = vmatprep.subr.mxu0 0.0
    %142 = vmatpush1.msra.mxu0 0.0
    %143 = vmatprep.subr.mxu0 0.0
    %144 = vmatpush1.msra.mxu0 0.0
    %145 = vmatprep.subr.mxu0 0.0
    %146 = vmatpush1.msra.mxu0 0.0
    %147 = vmatprep.subr.mxu0 0.0
    %148 = vmatpush1.msra.mxu0 0.0
    %149 = vmatprep.subr.mxu0 0.0
    %150 = vmatpush1.msra.mxu0 0.0
    %151 = vmatprep.subr.mxu0 0.0
    %152 = vmatpush1.msra.mxu0 0.0
    %153 = vmatprep.subr.mxu0 0.0
    %154 = vmatpush1.msra.mxu0 0.0
    %155 = vmatprep.subr.mxu0 0.0
    %156 = vmatpush1.msra.mxu0 0.0
    %157 = vmatprep.subr.mxu0 0.0
    %158 = vmatpush1.msra.mxu0 0.0
    %159 = vmatprep.subr.mxu0 0.0
    %160 = vmatpush1.msra.mxu0 0.0
    %161 = vmatprep.subr.mxu0 0.0
    %162 = vmatpush1.msra.mxu0 0.0
    %163 = vmatprep.subr.mxu0 0.0
    %164 = vmatpush1.msra.mxu0 0.0
    %165 = vmatprep.subr.mxu0 0.0
    %166 = vmatpush1.msra.mxu0 0.0
    %167 = vmatprep.subr.mxu0 0.0
    %168 = vmatpush1.msra.mxu0 0.0
    %169 = vmatprep.subr.mxu0 0.0
    %170 = vmatpush1.msra.mxu0 0.0
    %171 = vmatprep.subr.mxu0 0.0
    %172 = vmatpush1.msra.mxu0 0.0
    %173 = vmatprep.subr.mxu0 0.0
    %174 = vmatpush1.msra.mxu0 0.0
    %175 = vmatprep.subr.mxu0 0.0
    %176 = vmatpush1.msra.mxu0 0.0
    %177 = vmatprep.subr.mxu0 0.0
    %178 = vmatpush1.msra.mxu0 0.0
    %179 = vmatprep.subr.mxu0 0.0
    %180 = vmatpush1.msra.mxu0 0.0
    %181 = vmatprep.subr.mxu0 0.0
    %182 = vmatpush1.msra.mxu0 0.0
    %183 = vmatprep.subr.mxu0 0.0
    %184 = vmatpush1.msra.mxu0 0.0
    %185 = vmatprep.subr.mxu0 0.0
    %186 = vmatpush1.msra.mxu0 0.0
    %187 = vmatprep.mubr.f32.mxu0 0.0
    %188 = vmatmul.mubr.f32.gmra.mrb[0].mxu0 %v100
    %v189 = vpop.f32.mrb[0].mxu0
    %v190 = vadd.f32 0.0, %v189
    %v191 = vpop.f32.mrb[0].mxu0
    %192 = vmatprep.mubr.f32.mxu0 0.0
    %193 = vmatmul.mubr.f32.gmra.mrb[0].mxu0 %v103
    %v194 = vpop.f32.mrb[0].mxu0
    %v195 = vadd.f32 0.0, %v194
    %v196 = vpop.f32.mrb[0].mxu0
    %197 = vmatprep.mubr.f32.mxu0 0.0
    %198 = vmatmul.mubr.f32.gmra.mrb[0].mxu0 %v106
    %v199 = vpop.f32.mrb[0].mxu0
    %v200 = vadd.f32 0.0, %v199
    %v201 = vpop.f32.mrb[0].mxu0
    %202 = vmatprep.mubr.f32.mxu0 0.0
    %203 = vmatmul.mubr.f32.gmra.mrb[0].mxu0 %v109
    %v204 = vpop.f32.mrb[0].mxu0
    %v205 = vadd.f32 0.0, %v204
    %v206 = vpop.f32.mrb[0].mxu0
    %207 = vmatprep.mubr.f32.mxu0 0.0
    %208 = vmatmul.mubr.f32.gmra.mrb[0].mxu0 %v112
    %v209 = vpop.f32.mrb[0].mxu0
    %v210 = vadd.f32 0.0, %v209
    %v211 = vpop.f32.mrb[0].mxu0
    %212 = vmatprep.mubr.f32.mxu0 0.0
    %213 = vmatmul.mubr.f32.gmra.mrb[0].mxu0 %v115
    %v214 = vpop.f32.mrb[0].mxu0
    %v215 = vadd.f32 0.0, %v214
    %v216 = vpop.f32.mrb[0].mxu0
    %217 = vmatprep.mubr.f32.mxu0 0.0
    %218 = vmatmul.mubr.f32.gmra.mrb[0].mxu0 %v118
    %v219 = vpop.f32.mrb[0].mxu0
    %v220 = vadd.f32 0.0, %v219
    %v221 = vpop.f32.mrb[0].mxu0
    %222 = vmatprep.mubr.f32.mxu0 0.0
    %223 = vmatmul.mubr.f32.gmra.mrb[0].mxu0 %v121
    %v224 = vpop.f32.mrb[0].mxu0
    %v225 = vadd.f32 0.0, %v224
    %v226 = vpop.f32.mrb[0].mxu0
    %227 = vdwg.mxu0
    %v229 = vsel %vm98, %v85, 0
    %231 = vmatprep.subr.mxu0 0.0
    %232 = vmatpush1.msra.mxu0 %v95
    %233 = vmatprep.subr.mxu0 0.0
    %234 = vmatpush1.msra.mxu0 0.0
    %235 = vmatprep.subr.mxu0 0.0
    %236 = vmatpush1.msra.mxu0 0.0
    %237 = vmatprep.subr.mxu0 0.0
    %238 = vmatpush1.msra.mxu0 0.0
    %239 = vmatprep.subr.mxu0 0.0
    %240 = vmatpush1.msra.mxu0 0.0
    %241 = vmatprep.subr.mxu0 0.0
    %242 = vmatpush1.msra.mxu0 0.0
    %243 = vmatprep.subr.mxu0 0.0
    %244 = vmatpush1.msra.mxu0 0.0
    %245 = vmatprep.subr.mxu0 0.0
    %246 = vmatpush1.msra.mxu0 0.0
    %247 = vmatprep.subr.mxu0 0.0
    %248 = vmatpush1.msra.mxu0 0.0
    %249 = vmatprep.subr.mxu0 0.0
    %250 = vmatpush1.msra.mxu0 0.0
    %251 = vmatprep.subr.mxu0 0.0
    %252 = vmatpush1.msra.mxu0 0.0
    %253 = vmatprep.subr.mxu0 0.0
    %254 = vmatpush1.msra.mxu0 0.0
    %255 = vmatprep.subr.mxu0 0.0
    %256 = vmatpush1.msra.mxu0 0.0
    %257 = vmatprep.subr.mxu0 0.0
    %258 = vmatpush1.msra.mxu0 0.0
    %259 = vmatprep.subr.mxu0 0.0
    %260 = vmatpush1.msra.mxu0 0.0
    %261 = vmatprep.subr.mxu0 0.0
    %262 = vmatpush1.msra.mxu0 0.0
    %263 = vmatprep.subr.mxu0 0.0
    %264 = vmatpush1.msra.mxu0 0.0
    %265 = vmatprep.subr.mxu0 0.0
    %266 = vmatpush1.msra.mxu0 0.0
    %267 = vmatprep.subr.mxu0 0.0
    %268 = vmatpush1.msra.mxu0 0.0
    %269 = vmatprep.subr.mxu0 0.0
    %270 = vmatpush1.msra.mxu0 0.0
    %271 = vmatprep.subr.mxu0 0.0
    %272 = vmatpush1.msra.mxu0 0.0
    %273 = vmatprep.subr.mxu0 0.0
    %274 = vmatpush1.msra.mxu0 0.0
    %275 = vmatprep.subr.mxu0 0.0
    %276 = vmatpush1.msra.mxu0 0.0
    %277 = vmatprep.subr.mxu0 0.0
    %278 = vmatpush1.msra.mxu0 0.0
    %279 = vmatprep.subr.mxu0 0.0
    %280 = vmatpush1.msra.mxu0 0.0
    %281 = vmatprep.subr.mxu0 0.0
    %282 = vmatpush1.msra.mxu0 0.0
    %283 = vmatprep.subr.mxu0 0.0
    %284 = vmatpush1.msra.mxu0 0.0
    %285 = vmatprep.subr.mxu0 0.0
    %286 = vmatpush1.msra.mxu0 0.0
    %287 = vmatprep.subr.mxu0 0.0
    %288 = vmatpush1.msra.mxu0 0.0
    %289 = vmatprep.subr.mxu0 0.0
    %290 = vmatpush1.msra.mxu0 0.0
    %291 = vmatprep.subr.mxu0 0.0
    %292 = vmatpush1.msra.mxu0 0.0
    %293 = vmatprep.subr.mxu0 0.0
    %294 = vmatpush1.msra.mxu0 0.0
    %295 = vmatprep.mubr.f32.mxu0 0.0
    %296 = vmatmul.mubr.f32.gmra.mrb[0].mxu0 %v229
    %v297 = vpop.f32.mrb[0].mxu0
    %v298 = vadd.f32 %v190, %v297
    %v299 = vpop.f32.mrb[0].mxu0
    %300 = vmatprep.mubr.f32.mxu0 0.0
    %301 = vmatmul.mubr.f32.gmra.mrb[0].mxu0 %v100
    %v302 = vpop.f32.mrb[0].mxu0
    %v303 = vadd.f32 %v195, %v302
    %v304 = vpop.f32.mrb[0].mxu0
    %305 = vmatprep.mubr.f32.mxu0 0.0
    %306 = vmatmul.mubr.f32.gmra.mrb[0].mxu0 %v103
    %v307 = vpop.f32.mrb[0].mxu0
    %v308 = vadd.f32 %v200, %v307
    %v309 = vpop.f32.mrb[0].mxu0
    %310 = vmatprep.mubr.f32.mxu0 0.0
    %311 = vmatmul.mubr.f32.gmra.mrb[0].mxu0 %v106
    %v312 = vpop.f32.mrb[0].mxu0
    %v313 = vadd.f32 %v205, %v312
    %v314 = vpop.f32.mrb[0].mxu0
    %315 = vmatprep.mubr.f32.mxu0 0.0
    %316 = vmatmul.mubr.f32.gmra.mrb[0].mxu0 %v109
    %v317 = vpop.f32.mrb[0].mxu0
    %v318 = vadd.f32 %v210, %v317
    %v319 = vpop.f32.mrb[0].mxu0
    %320 = vmatprep.mubr.f32.mxu0 0.0
    %321 = vmatmul.mubr.f32.gmra.mrb[0].mxu0 %v112
    %v322 = vpop.f32.mrb[0].mxu0
    %v323 = vadd.f32 %v215, %v322
    %v324 = vpop.f32.mrb[0].mxu0
    %325 = vmatprep.mubr.f32.mxu0 0.0
    %326 = vmatmul.mubr.f32.gmra.mrb[0].mxu0 %v115
    %v327 = vpop.f32.mrb[0].mxu0
    %v328 = vadd.f32 %v220, %v327
    %v329 = vpop.f32.mrb[0].mxu0
    %330 = vmatprep.mubr.f32.mxu0 0.0
    %331 = vmatmul.mubr.f32.gmra.mrb[0].mxu0 %v118
    %v332 = vpop.f32.mrb[0].mxu0
    %v333 = vadd.f32 %v225, %v332
    %v334 = vpop.f32.mrb[0].mxu0
    %335 = vdwg.mxu0
    %s336 = scalar_lea.vmem [#allocation3], 16
    %v337 = vld [vmem:[%s336] sm:$0xff]
    %v339 = vsel %vm98, %v94, 0
    %341 = vmatprep.subr.mxu0 0.0
    %342 = vmatpush1.msra.mxu0 %v337
    %343 = vmatprep.subr.mxu0 0.0
    %344 = vmatpush1.msra.mxu0 0.0
    %345 = vmatprep.subr.mxu0 0.0
    %346 = vmatpush1.msra.mxu0 0.0
    %347 = vmatprep.subr.mxu0 0.0
    %348 = vmatpush1.msra.mxu0 0.0
    %349 = vmatprep.subr.mxu0 0.0
    %350 = vmatpush1.msra.mxu0 0.0
    %351 = vmatprep.subr.mxu0 0.0
    %352 = vmatpush1.msra.mxu0 0.0
    %353 = vmatprep.subr.mxu0 0.0
    %354 = vmatpush1.msra.mxu0 0.0
    %355 = vmatprep.subr.mxu0 0.0
    %356 = vmatpush1.msra.mxu0 0.0
    %357 = vmatprep.subr.mxu0 0.0
    %358 = vmatpush1.msra.mxu0 0.0
    %359 = vmatprep.subr.mxu0 0.0
    %360 = vmatpush1.msra.mxu0 0.0
    %361 = vmatprep.subr.mxu0 0.0
    %362 = vmatpush1.msra.mxu0 0.0
    %363 = vmatprep.subr.mxu0 0.0
    %364 = vmatpush1.msra.mxu0 0.0
    %365 = vmatprep.subr.mxu0 0.0
    %366 = vmatpush1.msra.mxu0 0.0
    %367 = vmatprep.subr.mxu0 0.0
    %368 = vmatpush1.msra.mxu0 0.0
    %369 = vmatprep.subr.mxu0 0.0
    %370 = vmatpush1.msra.mxu0 0.0
    %371 = vmatprep.subr.mxu0 0.0
    %372 = vmatpush1.msra.mxu0 0.0
    %373 = vmatprep.subr.mxu0 0.0
    %374 = vmatpush1.msra.mxu0 0.0
    %375 = vmatprep.subr.mxu0 0.0
    %376 = vmatpush1.msra.mxu0 0.0
    %377 = vmatprep.subr.mxu0 0.0
    %378 = vmatpush1.msra.mxu0 0.0
    %379 = vmatprep.subr.mxu0 0.0
    %380 = vmatpush1.msra.mxu0 0.0
    %381 = vmatprep.subr.mxu0 0.0
    %382 = vmatpush1.msra.mxu0 0.0
    %383 = vmatprep.subr.mxu0 0.0
    %384 = vmatpush1.msra.mxu0 0.0
    %385 = vmatprep.subr.mxu0 0.0
    %386 = vmatpush1.msra.mxu0 0.0
    %387 = vmatprep.subr.mxu0 0.0
    %388 = vmatpush1.msra.mxu0 0.0
    %389 = vmatprep.subr.mxu0 0.0
    %390 = vmatpush1.msra.mxu0 0.0
    %391 = vmatprep.subr.mxu0 0.0
    %392 = vmatpush1.msra.mxu0 0.0
    %393 = vmatprep.subr.mxu0 0.0
    %394 = vmatpush1.msra.mxu0 0.0
    %395 = vmatprep.subr.mxu0 0.0
    %396 = vmatpush1.msra.mxu0 0.0
    %397 = vmatprep.subr.mxu0 0.0
    %398 = vmatpush1.msra.mxu0 0.0
    %399 = vmatprep.subr.mxu0 0.0
    %400 = vmatpush1.msra.mxu0 0.0
    %401 = vmatprep.subr.mxu0 0.0
    %402 = vmatpush1.msra.mxu0 0.0
    %403 = vmatprep.subr.mxu0 0.0
    %404 = vmatpush1.msra.mxu0 0.0
    %405 = vmatprep.mubr.f32.mxu0 0.0
    %406 = vmatmul.mubr.f32.gmra.mrb[0].mxu0 %v103
    %v407 = vpop.f32.mrb[0].mxu0
    %v408 = vadd.f32 0.0, %v407
    %v409 = vpop.f32.mrb[0].mxu0
    %410 = vmatprep.mubr.f32.mxu0 0.0
    %411 = vmatmul.mubr.f32.gmra.mrb[0].mxu0 %v106
    %v412 = vpop.f32.mrb[0].mxu0
    %v413 = vadd.f32 0.0, %v412
    %v414 = vpop.f32.mrb[0].mxu0
    %415 = vmatprep.mubr.f32.mxu0 0.0
    %416 = vmatmul.mubr.f32.gmra.mrb[0].mxu0 %v109
    %v417 = vpop.f32.mrb[0].mxu0
    %v418 = vadd.f32 0.0, %v417
    %v419 = vpop.f32.mrb[0].mxu0
    %420 = vmatprep.mubr.f32.mxu0 0.0
    %421 = vmatmul.mubr.f32.gmra.mrb[0].mxu0 %v112
    %v422 = vpop.f32.mrb[0].mxu0
    %v423 = vadd.f32 0.0, %v422
    %v424 = vpop.f32.mrb[0].mxu0
    %425 = vmatprep.mubr.f32.mxu0 0.0
    %426 = vmatmul.mubr.f32.gmra.mrb[0].mxu0 %v115
    %v427 = vpop.f32.mrb[0].mxu0
    %v428 = vadd.f32 0.0, %v427
    %v429 = vpop.f32.mrb[0].mxu0
    %430 = vmatprep.mubr.f32.mxu0 0.0
    %431 = vmatmul.mubr.f32.gmra.mrb[0].mxu0 %v118
    %v432 = vpop.f32.mrb[0].mxu0
    %v433 = vadd.f32 0.0, %v432
    %v434 = vpop.f32.mrb[0].mxu0
    %435 = vmatprep.mubr.f32.mxu0 0.0
    %436 = vmatmul.mubr.f32.gmra.mrb[0].mxu0 %v121
    %v437 = vpop.f32.mrb[0].mxu0
    %v438 = vadd.f32 0.0, %v437
    %v439 = vpop.f32.mrb[0].mxu0
    %440 = vmatprep.mubr.f32.mxu0 0.0
    %441 = vmatmul.mubr.f32.gmra.mrb[0].mxu0 %v339
    %v442 = vpop.f32.mrb[0].mxu0
    %v443 = vadd.f32 0.0, %v442
    %v444 = vpop.f32.mrb[0].mxu0
    %445 = vdwg.mxu0
    %v446 = vadd.f32 %v298, %v408
    %v447 = vadd.f32 %v303, %v413
    %v448 = vadd.f32 %v308, %v418
    %v449 = vadd.f32 %v313, %v423
    %v450 = vadd.f32 %v318, %v428
    %v451 = vadd.f32 %v323, %v433
    %v452 = vadd.f32 %v328, %v438
    %v453 = vadd.f32 %v333, %v443
    %v454 = vld [vmem:[%s2] sm:$0x1]
    %v456 = vlaneseq
    %v457 = vshrl.u32 %v456, 7
    %v458 = vsub.s32 0, %v457
    %v459 = vrot.slane %v454, %v458
    %v461 = vadd.f32 %v446, %v459
    %v462 = vadd.f32 %v447, %v459
    %v463 = vadd.f32 %v448, %v459
    %v464 = vadd.f32 %v449, %v459
    %v465 = vadd.f32 %v450, %v459
    %v466 = vadd.f32 %v451, %v459
    %v467 = vadd.f32 %v452, %v459
    %v468 = vadd.f32 %v453, %v459
    %v469 = vmax.f32 %v461, 0.0
    %v470 = vmax.f32 %v462, 0.0
    %v471 = vmax.f32 %v463, 0.0
    %v472 = vmax.f32 %v464, 0.0
    %v473 = vmax.f32 %v465, 0.0
    %v474 = vmax.f32 %v466, 0.0
    %v475 = vmax.f32 %v467, 0.0
    %v476 = vmax.f32 %v468, 0.0
    %v477 = vld [vmem:[%s3] sm:$0xff]
    %v478 = vld [vmem:[%s3 + $0x8] sm:$0xff]
    %v479 = vld [vmem:[%s3 + $0x10] sm:$0xff]
    %v480 = vld [vmem:[%s3 + $0x18] sm:$0xff]
    %v481 = vld [vmem:[%s3 + $0x20] sm:$0xff]
    %v482 = vld [vmem:[%s3 + $0x28] sm:$0xff]
    %v483 = vld [vmem:[%s3 + $0x30] sm:$0xff]
    %v484 = vld [vmem:[%s3 + $0x38] sm:$0xff]
    %s485 = scalar_lea.vmem %s3, 64
    %v486 = vld [vmem:[%s485] sm:$0xff]
    %v487 = vld [vmem:[%s485 + $0x8] sm:$0xff]
    %v488 = vld [vmem:[%s485 + $0x10] sm:$0xff]
    %v489 = vld [vmem:[%s485 + $0x18] sm:$0xff]
    %v490 = vld [vmem:[%s485 + $0x20] sm:$0xff]
    %v491 = vld [vmem:[%s485 + $0x28] sm:$0xff]
    %v492 = vld [vmem:[%s485 + $0x30] sm:$0xff]
    %v493 = vld [vmem:[%s485 + $0x38] sm:$0xff]
    %vm494 = vcmask 523264
    %v496 = vsel %vm494, %v469, 0
    %v499 = vsel %vm494, %v470, 0
    %v502 = vsel %vm494, %v471, 0
    %v505 = vsel %vm494, %v472, 0
    %v508 = vsel %vm494, %v473, 0
    %v511 = vsel %vm494, %v474, 0
    %v514 = vsel %vm494, %v475, 0
    %v517 = vsel %vm494, %v476, 0
    %519 = vmatprep.subr.mxu0 0.0
    %520 = vmatpush1.msra.mxu0 %v486
    %521 = vmatprep.subr.mxu0 0.0
    %522 = vmatpush1.msra.mxu0 %v487
    %523 = vmatprep.subr.mxu0 0.0
    %524 = vmatpush1.msra.mxu0 %v488
    %525 = vmatprep.subr.mxu0 0.0
    %526 = vmatpush1.msra.mxu0 %v489
    %527 = vmatprep.subr.mxu0 0.0
    %528 = vmatpush1.msra.mxu0 %v490
    %529 = vmatprep.subr.mxu0 0.0
    %530 = vmatpush1.msra.mxu0 %v491
    %531 = vmatprep.subr.mxu0 0.0
    %532 = vmatpush1.msra.mxu0 %v492
    %533 = vmatprep.subr.mxu0 0.0
    %534 = vmatpush1.msra.mxu0 %v493
    %535 = vmatprep.subr.mxu0 0.0
    %536 = vmatpush1.msra.mxu0 0.0
    %537 = vmatprep.subr.mxu0 0.0
    %538 = vmatpush1.msra.mxu0 0.0
    %539 = vmatprep.subr.mxu0 0.0
    %540 = vmatpush1.msra.mxu0 0.0
    %541 = vmatprep.subr.mxu0 0.0
    %542 = vmatpush1.msra.mxu0 0.0
    %543 = vmatprep.subr.mxu0 0.0
    %544 = vmatpush1.msra.mxu0 0.0
    %545 = vmatprep.subr.mxu0 0.0
    %546 = vmatpush1.msra.mxu0 0.0
    %547 = vmatprep.subr.mxu0 0.0
    %548 = vmatpush1.msra.mxu0 0.0
    %549 = vmatprep.subr.mxu0 0.0
    %550 = vmatpush1.msra.mxu0 0.0
    %551 = vmatprep.subr.mxu0 0.0
    %552 = vmatpush1.msra.mxu0 0.0
    %553 = vmatprep.subr.mxu0 0.0
    %554 = vmatpush1.msra.mxu0 0.0
    %555 = vmatprep.subr.mxu0 0.0
    %556 = vmatpush1.msra.mxu0 0.0
    %557 = vmatprep.subr.mxu0 0.0
    %558 = vmatpush1.msra.mxu0 0.0
    %559 = vmatprep.subr.mxu0 0.0
    %560 = vmatpush1.msra.mxu0 0.0
    %561 = vmatprep.subr.mxu0 0.0
    %562 = vmatpush1.msra.mxu0 0.0
    %563 = vmatprep.subr.mxu0 0.0
    %564 = vmatpush1.msra.mxu0 0.0
    %565 = vmatprep.subr.mxu0 0.0
    %566 = vmatpush1.msra.mxu0 0.0
    %567 = vmatprep.subr.mxu0 0.0
    %568 = vmatpush1.msra.mxu0 0.0
    %569 = vmatprep.subr.mxu0 0.0
    %570 = vmatpush1.msra.mxu0 0.0
    %571 = vmatprep.subr.mxu0 0.0
    %572 = vmatpush1.msra.mxu0 0.0
    %573 = vmatprep.subr.mxu0 0.0
    %574 = vmatpush1.msra.mxu0 0.0
    %575 = vmatprep.subr.mxu0 0.0
    %576 = vmatpush1.msra.mxu0 0.0
    %577 = vmatprep.subr.mxu0 0.0
    %578 = vmatpush1.msra.mxu0 0.0
    %579 = vmatprep.subr.mxu0 0.0
    %580 = vmatpush1.msra.mxu0 0.0
    %581 = vmatprep.subr.mxu0 0.0
    %582 = vmatpush1.msra.mxu0 0.0
    %583 = vmatprep.mubr.f32.mxu0 0.0
    %584 = vmatmul.mubr.f32.gmra.mrb[0].mxu0 %v496
    %v585 = vpop.f32.mrb[0].mxu0
    %v586 = vadd.f32 0.0, %v585
    %v587 = vpop.f32.mrb[0].mxu0
    %588 = vmatprep.mubr.f32.mxu0 0.0
    %589 = vmatmul.mubr.f32.gmra.mrb[0].mxu0 %v499
    %v590 = vpop.f32.mrb[0].mxu0
    %v591 = vadd.f32 0.0, %v590
    %v592 = vpop.f32.mrb[0].mxu0
    %593 = vmatprep.mubr.f32.mxu0 0.0
    %594 = vmatmul.mubr.f32.gmra.mrb[0].mxu0 %v502
    %v595 = vpop.f32.mrb[0].mxu0
    %v596 = vadd.f32 0.0, %v595
    %v597 = vpop.f32.mrb[0].mxu0
    %598 = vmatprep.mubr.f32.mxu0 0.0
    %599 = vmatmul.mubr.f32.gmra.mrb[0].mxu0 %v505
    %v600 = vpop.f32.mrb[0].mxu0
    %v601 = vadd.f32 0.0, %v600
    %v602 = vpop.f32.mrb[0].mxu0
    %603 = vmatprep.mubr.f32.mxu0 0.0
    %604 = vmatmul.mubr.f32.gmra.mrb[0].mxu0 %v508
    %v605 = vpop.f32.mrb[0].mxu0
    %v606 = vadd.f32 0.0, %v605
    %v607 = vpop.f32.mrb[0].mxu0
    %608 = vmatprep.mubr.f32.mxu0 0.0
    %609 = vmatmul.mubr.f32.gmra.mrb[0].mxu0 %v511
    %v610 = vpop.f32.mrb[0].mxu0
    %v611 = vadd.f32 0.0, %v610
    %v612 = vpop.f32.mrb[0].mxu0
    %613 = vmatprep.mubr.f32.mxu0 0.0
    %614 = vmatmul.mubr.f32.gmra.mrb[0].mxu0 %v514
    %v615 = vpop.f32.mrb[0].mxu0
    %v616 = vadd.f32 0.0, %v615
    %v617 = vpop.f32.mrb[0].mxu0
    %618 = vmatprep.mubr.f32.mxu0 0.0
    %619 = vmatmul.mubr.f32.gmra.mrb[0].mxu0 %v517
    %v620 = vpop.f32.mrb[0].mxu0
    %v621 = vadd.f32 0.0, %v620
    %v622 = vpop.f32.mrb[0].mxu0
    %623 = vdwg.mxu0
    %v625 = vsel %vm494, 0.0, 0
    %627 = vmatprep.subr.mxu0 0.0
    %628 = vmatpush1.msra.mxu0 %v477
    %629 = vmatprep.subr.mxu0 0.0
    %630 = vmatpush1.msra.mxu0 %v478
    %631 = vmatprep.subr.mxu0 0.0
    %632 = vmatpush1.msra.mxu0 %v479
    %633 = vmatprep.subr.mxu0 0.0
    %634 = vmatpush1.msra.mxu0 %v480
    %635 = vmatprep.subr.mxu0 0.0
    %636 = vmatpush1.msra.mxu0 %v481
    %637 = vmatprep.subr.mxu0 0.0
    %638 = vmatpush1.msra.mxu0 %v482
    %639 = vmatprep.subr.mxu0 0.0
    %640 = vmatpush1.msra.mxu0 %v483
    %641 = vmatprep.subr.mxu0 0.0
    %642 = vmatpush1.msra.mxu0 %v484
    %643 = vmatprep.subr.mxu0 0.0
    %644 = vmatpush1.msra.mxu0 0.0
    %645 = vmatprep.subr.mxu0 0.0
    %646 = vmatpush1.msra.mxu0 0.0
    %647 = vmatprep.subr.mxu0 0.0
    %648 = vmatpush1.msra.mxu0 0.0
    %649 = vmatprep.subr.mxu0 0.0
    %650 = vmatpush1.msra.mxu0 0.0
    %651 = vmatprep.subr.mxu0 0.0
    %652 = vmatpush1.msra.mxu0 0.0
    %653 = vmatprep.subr.mxu0 0.0
    %654 = vmatpush1.msra.mxu0 0.0
    %655 = vmatprep.subr.mxu0 0.0
    %656 = vmatpush1.msra.mxu0 0.0
    %657 = vmatprep.subr.mxu0 0.0
    %658 = vmatpush1.msra.mxu0 0.0
    %659 = vmatprep.subr.mxu0 0.0
    %660 = vmatpush1.msra.mxu0 0.0
    %661 = vmatprep.subr.mxu0 0.0
    %662 = vmatpush1.msra.mxu0 0.0
    %663 = vmatprep.subr.mxu0 0.0
    %664 = vmatpush1.msra.mxu0 0.0
    %665 = vmatprep.subr.mxu0 0.0
    %666 = vmatpush1.msra.mxu0 0.0
    %667 = vmatprep.subr.mxu0 0.0
    %668 = vmatpush1.msra.mxu0 0.0
    %669 = vmatprep.subr.mxu0 0.0
    %670 = vmatpush1.msra.mxu0 0.0
    %671 = vmatprep.subr.mxu0 0.0
    %672 = vmatpush1.msra.mxu0 0.0
    %673 = vmatprep.subr.mxu0 0.0
    %674 = vmatpush1.msra.mxu0 0.0
    %675 = vmatprep.subr.mxu0 0.0
    %676 = vmatpush1.msra.mxu0 0.0
    %677 = vmatprep.subr.mxu0 0.0
    %678 = vmatpush1.msra.mxu0 0.0
    %679 = vmatprep.subr.mxu0 0.0
    %680 = vmatpush1.msra.mxu0 0.0
    %681 = vmatprep.subr.mxu0 0.0
    %682 = vmatpush1.msra.mxu0 0.0
    %683 = vmatprep.subr.mxu0 0.0
    %684 = vmatpush1.msra.mxu0 0.0
    %685 = vmatprep.subr.mxu0 0.0
    %686 = vmatpush1.msra.mxu0 0.0
    %687 = vmatprep.subr.mxu0 0.0
    %688 = vmatpush1.msra.mxu0 0.0
    %689 = vmatprep.subr.mxu0 0.0
    %690 = vmatpush1.msra.mxu0 0.0
    %691 = vmatprep.mubr.f32.mxu0 0.0
    %692 = vmatmul.mubr.f32.gmra.mrb[0].mxu0 %v625
    %v693 = vpop.f32.mrb[0].mxu0
    %v694 = vadd.f32 %v586, %v693
    %v695 = vpop.f32.mrb[0].mxu0
    %696 = vmatprep.mubr.f32.mxu0 0.0
    %697 = vmatmul.mubr.f32.gmra.mrb[0].mxu0 %v496
    %v698 = vpop.f32.mrb[0].mxu0
    %v699 = vadd.f32 %v591, %v698
    %v700 = vpop.f32.mrb[0].mxu0
    %701 = vmatprep.mubr.f32.mxu0 0.0
    %702 = vmatmul.mubr.f32.gmra.mrb[0].mxu0 %v499
    %v703 = vpop.f32.mrb[0].mxu0
    %v704 = vadd.f32 %v596, %v703
    %v705 = vpop.f32.mrb[0].mxu0
    %706 = vmatprep.mubr.f32.mxu0 0.0
    %707 = vmatmul.mubr.f32.gmra.mrb[0].mxu0 %v502
    %v708 = vpop.f32.mrb[0].mxu0
    %v709 = vadd.f32 %v601, %v708
    %v710 = vpop.f32.mrb[0].mxu0
    %711 = vmatprep.mubr.f32.mxu0 0.0
    %712 = vmatmul.mubr.f32.gmra.mrb[0].mxu0 %v505
    %v713 = vpop.f32.mrb[0].mxu0
    %v714 = vadd.f32 %v606, %v713
    %v715 = vpop.f32.mrb[0].mxu0
    %716 = vmatprep.mubr.f32.mxu0 0.0
    %717 = vmatmul.mubr.f32.gmra.mrb[0].mxu0 %v508
    %v718 = vpop.f32.mrb[0].mxu0
    %v719 = vadd.f32 %v611, %v718
    %v720 = vpop.f32.mrb[0].mxu0
    %721 = vmatprep.mubr.f32.mxu0 0.0
    %722 = vmatmul.mubr.f32.gmra.mrb[0].mxu0 %v511
    %v723 = vpop.f32.mrb[0].mxu0
    %v724 = vadd.f32 %v616, %v723
    %v725 = vpop.f32.mrb[0].mxu0
    %726 = vmatprep.mubr.f32.mxu0 0.0
    %727 = vmatmul.mubr.f32.gmra.mrb[0].mxu0 %v514
    %v728 = vpop.f32.mrb[0].mxu0
    %v729 = vadd.f32 %v621, %v728
    %v730 = vpop.f32.mrb[0].mxu0
    %731 = vdwg.mxu0
    %s732 = scalar_lea.vmem %s3, 128
    %v733 = vld [vmem:[%s732] sm:$0xff]
    %v734 = vld [vmem:[%s732 + $0x8] sm:$0xff]
    %v735 = vld [vmem:[%s732 + $0x10] sm:$0xff]
    %v736 = vld [vmem:[%s732 + $0x18] sm:$0xff]
    %v737 = vld [vmem:[%s732 + $0x20] sm:$0xff]
    %v738 = vld [vmem:[%s732 + $0x28] sm:$0xff]
    %v739 = vld [vmem:[%s732 + $0x30] sm:$0xff]
    %v740 = vld [vmem:[%s732 + $0x38] sm:$0xff]
    %741 = vmatprep.subr.mxu0 0.0
    %742 = vmatpush1.msra.mxu0 %v733
    %743 = vmatprep.subr.mxu0 0.0
    %744 = vmatpush1.msra.mxu0 %v734
    %745 = vmatprep.subr.mxu0 0.0
    %746 = vmatpush1.msra.mxu0 %v735
    %747 = vmatprep.subr.mxu0 0.0
    %748 = vmatpush1.msra.mxu0 %v736
    %749 = vmatprep.subr.mxu0 0.0
    %750 = vmatpush1.msra.mxu0 %v737
    %751 = vmatprep.subr.mxu0 0.0
    %752 = vmatpush1.msra.mxu0 %v738
    %753 = vmatprep.subr.mxu0 0.0
    %754 = vmatpush1.msra.mxu0 %v739
    %755 = vmatprep.subr.mxu0 0.0
    %756 = vmatpush1.msra.mxu0 %v740
    %757 = vmatprep.subr.mxu0 0.0
    %758 = vmatpush1.msra.mxu0 0.0
    %759 = vmatprep.subr.mxu0 0.0
    %760 = vmatpush1.msra.mxu0 0.0
    %761 = vmatprep.subr.mxu0 0.0
    %762 = vmatpush1.msra.mxu0 0.0
    %763 = vmatprep.subr.mxu0 0.0
    %764 = vmatpush1.msra.mxu0 0.0
    %765 = vmatprep.subr.mxu0 0.0
    %766 = vmatpush1.msra.mxu0 0.0
    %767 = vmatprep.subr.mxu0 0.0
    %768 = vmatpush1.msra.mxu0 0.0
    %769 = vmatprep.subr.mxu0 0.0
    %770 = vmatpush1.msra.mxu0 0.0
    %771 = vmatprep.subr.mxu0 0.0
    %772 = vmatpush1.msra.mxu0 0.0
    %773 = vmatprep.subr.mxu0 0.0
    %774 = vmatpush1.msra.mxu0 0.0
    %775 = vmatprep.subr.mxu0 0.0
    %776 = vmatpush1.msra.mxu0 0.0
    %777 = vmatprep.subr.mxu0 0.0
    %778 = vmatpush1.msra.mxu0 0.0
    %779 = vmatprep.subr.mxu0 0.0
    %780 = vmatpush1.msra.mxu0 0.0
    %781 = vmatprep.subr.mxu0 0.0
    %782 = vmatpush1.msra.mxu0 0.0
    %783 = vmatprep.subr.mxu0 0.0
    %784 = vmatpush1.msra.mxu0 0.0
    %785 = vmatprep.subr.mxu0 0.0
    %786 = vmatpush1.msra.mxu0 0.0
    %787 = vmatprep.subr.mxu0 0.0
    %788 = vmatpush1.msra.mxu0 0.0
    %789 = vmatprep.subr.mxu0 0.0
    %790 = vmatpush1.msra.mxu0 0.0
    %791 = vmatprep.subr.mxu0 0.0
    %792 = vmatpush1.msra.mxu0 0.0
    %793 = vmatprep.subr.mxu0 0.0
    %794 = vmatpush1.msra.mxu0 0.0
    %795 = vmatprep.subr.mxu0 0.0
    %796 = vmatpush1.msra.mxu0 0.0
    %797 = vmatprep.subr.mxu0 0.0
    %798 = vmatpush1.msra.mxu0 0.0
    %799 = vmatprep.subr.mxu0 0.0
    %800 = vmatpush1.msra.mxu0 0.0
    %801 = vmatprep.subr.mxu0 0.0
    %802 = vmatpush1.msra.mxu0 0.0
    %803 = vmatprep.subr.mxu0 0.0
    %804 = vmatpush1.msra.mxu0 0.0
    %805 = vmatprep.mubr.f32.mxu0 0.0
    %806 = vmatmul.mubr.f32.gmra.mrb[0].mxu0 %v499
    %v807 = vpop.f32.mrb[0].mxu0
    %v808 = vadd.f32 0.0, %v807
    %v809 = vpop.f32.mrb[0].mxu0
    %810 = vmatprep.mubr.f32.mxu0 0.0
    %811 = vmatmul.mubr.f32.gmra.mrb[0].mxu0 %v502
    %v812 = vpop.f32.mrb[0].mxu0
    %v813 = vadd.f32 0.0, %v812
    %v814 = vpop.f32.mrb[0].mxu0
    %815 = vmatprep.mubr.f32.mxu0 0.0
    %816 = vmatmul.mubr.f32.gmra.mrb[0].mxu0 %v505
    %v817 = vpop.f32.mrb[0].mxu0
    %v818 = vadd.f32 0.0, %v817
    %v819 = vpop.f32.mrb[0].mxu0
    %820 = vmatprep.mubr.f32.mxu0 0.0
    %821 = vmatmul.mubr.f32.gmra.mrb[0].mxu0 %v508
    %v822 = vpop.f32.mrb[0].mxu0
    %v823 = vadd.f32 0.0, %v822
    %v824 = vpop.f32.mrb[0].mxu0
    %825 = vmatprep.mubr.f32.mxu0 0.0
    %826 = vmatmul.mubr.f32.gmra.mrb[0].mxu0 %v511
    %v827 = vpop.f32.mrb[0].mxu0
    %v828 = vadd.f32 0.0, %v827
    %v829 = vpop.f32.mrb[0].mxu0
    %830 = vmatprep.mubr.f32.mxu0 0.0
    %831 = vmatmul.mubr.f32.gmra.mrb[0].mxu0 %v514
    %v832 = vpop.f32.mrb[0].mxu0
    %v833 = vadd.f32 0.0, %v832
    %v834 = vpop.f32.mrb[0].mxu0
    %835 = vmatprep.mubr.f32.mxu0 0.0
    %836 = vmatmul.mubr.f32.gmra.mrb[0].mxu0 %v517
    %v837 = vpop.f32.mrb[0].mxu0
    %v838 = vadd.f32 0.0, %v837
    %v839 = vpop.f32.mrb[0].mxu0
    %840 = vmatprep.mubr.f32.mxu0 0.0
    %841 = vmatmul.mubr.f32.gmra.mrb[0].mxu0 %v625
    %v842 = vpop.f32.mrb[0].mxu0
    %v843 = vadd.f32 0.0, %v842
    %v844 = vpop.f32.mrb[0].mxu0
    %845 = vdwg.mxu0
    %v846 = vadd.f32 %v694, %v808
    %v847 = vadd.f32 %v699, %v813
    %v848 = vadd.f32 %v704, %v818
    %v849 = vadd.f32 %v709, %v823
    %v850 = vadd.f32 %v714, %v828
    %v851 = vadd.f32 %v719, %v833
    %v852 = vadd.f32 %v724, %v838
    %v853 = vadd.f32 %v729, %v843
    %v854 = vld [vmem:[%s4] sm:$0x1]
    %v856 = vlaneseq
    %v857 = vshrl.u32 %v856, 7
    %v858 = vsub.s32 0, %v857
    %v859 = vrot.slane %v854, %v858
    %v861 = vadd.f32 %v846, %v859
    %v862 = vadd.f32 %v847, %v859
    %v863 = vadd.f32 %v848, %v859
    %v864 = vadd.f32 %v849, %v859
    %v865 = vadd.f32 %v850, %v859
    %v866 = vadd.f32 %v851, %v859
    %v867 = vadd.f32 %v852, %v859
    %v868 = vadd.f32 %v853, %v859
    %v869 = vmax.f32 %v861, 0.0
    %v870 = vmax.f32 %v862, 0.0
    %v871 = vmax.f32 %v863, 0.0
    %v872 = vmax.f32 %v864, 0.0
    %v873 = vmax.f32 %v865, 0.0
    %v874 = vmax.f32 %v866, 0.0
    %v875 = vmax.f32 %v867, 0.0
    %v876 = vmax.f32 %v868, 0.0
    %v877 = vld [vmem:[#allocation5] sm:$0xff]
    %v878 = vld [vmem:[#allocation5 + $0x8] sm:$0xff]
    %v879 = vld [vmem:[#allocation5 + $0x10] sm:$0xff]
    %v880 = vld [vmem:[#allocation5 + $0x18] sm:$0xff]
    %v881 = vld [vmem:[#allocation5 + $0x20] sm:$0xff]
    %v882 = vld [vmem:[#allocation5 + $0x28] sm:$0xff]
    %v883 = vld [vmem:[#allocation5 + $0x30] sm:$0xff]
    %v884 = vld [vmem:[#allocation5 + $0x38] sm:$0xff]
    %v885 = vld [vmem:[#allocation5 + $0x40] sm:$0xff]
    %v886 = vld [vmem:[#allocation5 + $0x48] sm:$0xff]
    %v887 = vld [vmem:[#allocation5 + $0x50] sm:$0xff]
    %v888 = vld [vmem:[#allocation5 + $0x58] sm:$0xff]
    %v889 = vld [vmem:[#allocation5 + $0x60] sm:$0xff]
    %v890 = vld [vmem:[#allocation5 + $0x68] sm:$0xff]
    %v891 = vld [vmem:[#allocation5 + $0x70] sm:$0xff]
    %v892 = vld [vmem:[#allocation5 + $0x78] sm:$0xff]
    %v893 = vld [vmem:[%s7] sm:$0x1]
    %v895 = vlaneseq
    %v896 = vshrl.u32 %v895, 7
    %v897 = vsub.s32 0, %v896
    %v898 = vrot.slane %v893, %v897
    %900 = vmatprep.subr.mxu0 0.0
    %901 = vmatpush1.msra.mxu0 %v877
    %902 = vmatprep.subr.mxu0 0.0
    %903 = vmatpush1.msra.mxu0 %v878
    %904 = vmatprep.subr.mxu0 0.0
    %905 = vmatpush1.msra.mxu0 %v879
    %906 = vmatprep.subr.mxu0 0.0
    %907 = vmatpush1.msra.mxu0 %v880
    %908 = vmatprep.subr.mxu0 0.0
    %909 = vmatpush1.msra.mxu0 %v881
    %910 = vmatprep.subr.mxu0 0.0
    %911 = vmatpush1.msra.mxu0 %v882
    %912 = vmatprep.subr.mxu0 0.0
    %913 = vmatpush1.msra.mxu0 %v883
    %914 = vmatprep.subr.mxu0 0.0
    %915 = vmatpush1.msra.mxu0 %v884
    %916 = vmatprep.subr.mxu0 0.0
    %917 = vmatpush1.msra.mxu0 %v885
    %918 = vmatprep.subr.mxu0 0.0
    %919 = vmatpush1.msra.mxu0 %v886
    %920 = vmatprep.subr.mxu0 0.0
    %921 = vmatpush1.msra.mxu0 %v887
    %922 = vmatprep.subr.mxu0 0.0
    %923 = vmatpush1.msra.mxu0 %v888
    %924 = vmatprep.subr.mxu0 0.0
    %925 = vmatpush1.msra.mxu0 %v889
    %926 = vmatprep.subr.mxu0 0.0
    %927 = vmatpush1.msra.mxu0 %v890
    %928 = vmatprep.subr.mxu0 0.0
    %929 = vmatpush1.msra.mxu0 %v891
    %930 = vmatprep.subr.mxu0 0.0
    %931 = vmatpush1.msra.mxu0 %v892
    %932 = vmatprep.subr.mxu0 0.0
    %933 = vmatpush1.msra.mxu0 0.0
    %934 = vmatprep.subr.mxu0 0.0
    %935 = vmatpush1.msra.mxu0 0.0
    %936 = vmatprep.subr.mxu0 0.0
    %937 = vmatpush1.msra.mxu0 0.0
    %938 = vmatprep.subr.mxu0 0.0
    %939 = vmatpush1.msra.mxu0 0.0
    %940 = vmatprep.subr.mxu0 0.0
    %941 = vmatpush1.msra.mxu0 0.0
    %942 = vmatprep.subr.mxu0 0.0
    %943 = vmatpush1.msra.mxu0 0.0
    %944 = vmatprep.subr.mxu0 0.0
    %945 = vmatpush1.msra.mxu0 0.0
    %946 = vmatprep.subr.mxu0 0.0
    %947 = vmatpush1.msra.mxu0 0.0
    %948 = vmatprep.subr.mxu0 0.0
    %949 = vmatpush1.msra.mxu0 0.0
    %950 = vmatprep.subr.mxu0 0.0
    %951 = vmatpush1.msra.mxu0 0.0
    %952 = vmatprep.subr.mxu0 0.0
    %953 = vmatpush1.msra.mxu0 0.0
    %954 = vmatprep.subr.mxu0 0.0
    %955 = vmatpush1.msra.mxu0 0.0
    %956 = vmatprep.subr.mxu0 0.0
    %957 = vmatpush1.msra.mxu0 0.0
    %958 = vmatprep.subr.mxu0 0.0
    %959 = vmatpush1.msra.mxu0 0.0
    %960 = vmatprep.subr.mxu0 0.0
    %961 = vmatpush1.msra.mxu0 0.0
    %962 = vmatprep.subr.mxu0 0.0
    %963 = vmatpush1.msra.mxu0 0.0
    %964 = vmatprep.mubr.f32.mxu0 0.0
    %965 = vmatmul.mubr.f32.gmra.mrb[0].mxu0 %v869
    %v966 = vpop.f32.mrb[0].mxu0
    %v967 = vadd.f32 %v898, %v966
    %v968 = vpop.f32.mrb[0].mxu0
    %969 = vmatprep.mubr.f32.mxu0 0.0
    %970 = vmatmul.mubr.f32.gmra.mrb[0].mxu0 %v870
    %v971 = vpop.f32.mrb[0].mxu0
    %v972 = vadd.f32 %v898, %v971
    %v973 = vpop.f32.mrb[0].mxu0
    %974 = vmatprep.mubr.f32.mxu0 0.0
    %975 = vmatmul.mubr.f32.gmra.mrb[0].mxu0 %v871
    %v976 = vpop.f32.mrb[0].mxu0
    %v977 = vadd.f32 %v898, %v976
    %v978 = vpop.f32.mrb[0].mxu0
    %979 = vmatprep.mubr.f32.mxu0 0.0
    %980 = vmatmul.mubr.f32.gmra.mrb[0].mxu0 %v872
    %v981 = vpop.f32.mrb[0].mxu0
    %v982 = vadd.f32 %v898, %v981
    %v983 = vpop.f32.mrb[0].mxu0
    %984 = vmatprep.mubr.f32.mxu0 0.0
    %985 = vmatmul.mubr.f32.gmra.mrb[0].mxu0 %v873
    %v986 = vpop.f32.mrb[0].mxu0
    %v987 = vadd.f32 %v898, %v986
    %v988 = vpop.f32.mrb[0].mxu0
    %989 = vmatprep.mubr.f32.mxu0 0.0
    %990 = vmatmul.mubr.f32.gmra.mrb[0].mxu0 %v874
    %v991 = vpop.f32.mrb[0].mxu0
    %v992 = vadd.f32 %v898, %v991
    %v993 = vpop.f32.mrb[0].mxu0
    %994 = vmatprep.mubr.f32.mxu0 0.0
    %995 = vmatmul.mubr.f32.gmra.mrb[0].mxu0 %v875
    %v996 = vpop.f32.mrb[0].mxu0
    %v997 = vadd.f32 %v898, %v996
    %v998 = vpop.f32.mrb[0].mxu0
    %999 = vmatprep.mubr.f32.mxu0 0.0
    %1000 = vmatmul.mubr.f32.gmra.mrb[0].mxu0 %v876
    %v1001 = vpop.f32.mrb[0].mxu0
    %v1002 = vadd.f32 %v898, %v1001
    %v1003 = vpop.f32.mrb[0].mxu0
    %1004 = vdwg.mxu0
    %1005 = vst [vmem:[#allocation2] sm:$0xff] %v967
    %1006 = vst [vmem:[#allocation2 + $0x8] sm:$0xff] %v972
    %1007 = vst [vmem:[#allocation2 + $0x10] sm:$0xff] %v977
    %1008 = vst [vmem:[#allocation2 + $0x18] sm:$0xff] %v982
    %1009 = vst [vmem:[#allocation2 + $0x20] sm:$0xff] %v987
    %1010 = vst [vmem:[#allocation2 + $0x28] sm:$0xff] %v992
    %1011 = vst [vmem:[#allocation2 + $0x30] sm:$0xff] %v997
    %1012 = vst [vmem:[#allocation2 + $0x38] sm:$0xff] %v1002
    %v1013 = vlaneseq
    %v1014 = vand.u32 %v1013, 127
    %vm1015 = vcmp.ge.s32.totalorder %v1014, 64
    %vm1016 = vcmp.lt.s32.totalorder %v1014, 96
    %vm1017 = vmand %vm1015, %vm1016
    %v1018 = vsel %vm1017, 1, 0
    %vm1019 = vcmp.eq.s32.totalorder %v1018, 1
    %v1020 = vld [vmem:[%s6] sm:$0xff]
    %v1021 = vld [vmem:[%s6 + $0x8] sm:$0xff]
    %v1022 = vld [vmem:[%s6 + $0x10] sm:$0xff]
    %v1023 = vld [vmem:[%s6 + $0x18] sm:$0xff]
    %v1024 = vld [vmem:[#allocation2] sm:$0xff]
    %vm1025 = vcmask 261120
    %v1026 = vsel %vm1025, 0.0, 0
    %1028 = vmatprep.subr.mxu0 0.0
    %1029 = vmatpush1.msra.mxu0 %v1020
    %1030 = vmatprep.subr.mxu0 0.0
    %1031 = vmatpush1.msra.mxu0 %v1021
    %1032 = vmatprep.subr.mxu0 0.0
    %1033 = vmatpush1.msra.mxu0 %v1022
    %1034 = vmatprep.subr.mxu0 0.0
    %1035 = vmatpush1.msra.mxu0 %v1023
    %1036 = vmatprep.subr.mxu0 0.0
    %1037 = vmatpush1.msra.mxu0 0.0
    %1038 = vmatprep.subr.mxu0 0.0
    %1039 = vmatpush1.msra.mxu0 0.0
    %1040 = vmatprep.subr.mxu0 0.0
    %1041 = vmatpush1.msra.mxu0 0.0
    %1042 = vmatprep.subr.mxu0 0.0
    %1043 = vmatpush1.msra.mxu0 0.0
    %1044 = vmatprep.subr.mxu0 0.0
    %1045 = vmatpush1.msra.mxu0 0.0
    %1046 = vmatprep.subr.mxu0 0.0
    %1047 = vmatpush1.msra.mxu0 0.0
    %1048 = vmatprep.subr.mxu0 0.0
    %1049 = vmatpush1.msra.mxu0 0.0
    %1050 = vmatprep.subr.mxu0 0.0
    %1051 = vmatpush1.msra.mxu0 0.0
    %1052 = vmatprep.subr.mxu0 0.0
    %1053 = vmatpush1.msra.mxu0 0.0
    %1054 = vmatprep.subr.mxu0 0.0
    %1055 = vmatpush1.msra.mxu0 0.0
    %1056 = vmatprep.subr.mxu0 0.0
    %1057 = vmatpush1.msra.mxu0 0.0
    %1058 = vmatprep.subr.mxu0 0.0
    %1059 = vmatpush1.msra.mxu0 0.0
    %1060 = vmatprep.subr.mxu0 0.0
    %1061 = vmatpush1.msra.mxu0 0.0
    %1062 = vmatprep.subr.mxu0 0.0
    %1063 = vmatpush1.msra.mxu0 0.0
    %1064 = vmatprep.subr.mxu0 0.0
    %1065 = vmatpush1.msra.mxu0 0.0
    %1066 = vmatprep.subr.mxu0 0.0
    %1067 = vmatpush1.msra.mxu0 0.0
    %1068 = vmatprep.subr.mxu0 0.0
    %1069 = vmatpush1.msra.mxu0 0.0
    %1070 = vmatprep.subr.mxu0 0.0
    %1071 = vmatpush1.msra.mxu0 0.0
    %1072 = vmatprep.subr.mxu0 0.0
    %1073 = vmatpush1.msra.mxu0 0.0
    %1074 = vmatprep.subr.mxu0 0.0
    %1075 = vmatpush1.msra.mxu0 0.0
    %1076 = vmatprep.subr.mxu0 0.0
    %1077 = vmatpush1.msra.mxu0 0.0
    %1078 = vmatprep.subr.mxu0 0.0
    %1079 = vmatpush1.msra.mxu0 0.0
    %1080 = vmatprep.subr.mxu0 0.0
    %1081 = vmatpush1.msra.mxu0 0.0
    %1082 = vmatprep.subr.mxu0 0.0
    %1083 = vmatpush1.msra.mxu0 0.0
    %1084 = vmatprep.subr.mxu0 0.0
    %1085 = vmatpush1.msra.mxu0 0.0
    %1086 = vmatprep.subr.mxu0 0.0
    %1087 = vmatpush1.msra.mxu0 0.0
    %1088 = vmatprep.subr.mxu0 0.0
    %1089 = vmatpush1.msra.mxu0 0.0
    %1090 = vmatprep.subr.mxu0 0.0
    %1091 = vmatpush1.msra.mxu0 0.0
    %1092 = vmatprep.mubr.f32.mxu0 0.0
    %1093 = vmatmul.mubr.f32.gmra.mrb[0].mxu0 %v1026
    %v1094 = vpop.f32.mrb[0].mxu0
    %v1095 = vadd.f32 0.0, %v1094
    %v1096 = vpop.f32.mrb[0].mxu0
    %1097 = vdwg.mxu0
    %v1098 = vadd.f32 %v1024, %v1095
    %v1099 = vtanh.pop %v1098
    %v1100 = vxor.u32 %v1098, 2147483648
    %v1101 = vmul.f32 %v1100, 1.442695
    %v1102 = vpow.pop %v1101
    %v1103 = vadd.f32 %v1102, 1.0
    %v1104 = vrcp.pop %v1103
    %v1105 = vmul.f32 1.0, %v1104
    %v1106 = vsel %vm1019, %v1099, %v1105
    %v1107 = vmul.f32 %v1106, 0.0
    %1109 = vrot.lane.b32.xlu0 %v1106, 64
    %v1110 = vpop.permute.xlu0 %1109
    %v1112 = vmul.f32 %v1106, %v1110
    %1114 = vrot.lane.b32.xlu0 %v1112, 32
    %v1115 = vpop.permute.xlu0 %1114
    %v1117 = vadd.f32 %v1107, %v1115
    %v1118 = vtanh.pop %v1117
    %1120 = vrot.lane.b32.xlu0 %v1118, 64
    %v1121 = vpop.permute.xlu0 %1120
    %v1123 = vmul.f32 %v1106, %v1121
    %s1124 = scalar_lea.vmem [#allocation2], 8
    %v1125 = vld [vmem:[%s1124] sm:$0xff]
    %1127 = vrot.lane.b32.xlu0 %v1123, 32
    %v1128 = vpop.permute.xlu0 %1127
    %v1129 = vsel %vm1025, %v1128, 0
    %1131 = vmatprep.subr.mxu0 0.0
    %1132 = vmatpush1.msra.mxu0 %v1020
    %1133 = vmatprep.subr.mxu0 0.0
    %1134 = vmatpush1.msra.mxu0 %v1021
    %1135 = vmatprep.subr.mxu0 0.0
    %1136 = vmatpush1.msra.mxu0 %v1022
    %1137 = vmatprep.subr.mxu0 0.0
    %1138 = vmatpush1.msra.mxu0 %v1023
    %1139 = vmatprep.subr.mxu0 0.0
    %1140 = vmatpush1.msra.mxu0 0.0
    %1141 = vmatprep.subr.mxu0 0.0
    %1142 = vmatpush1.msra.mxu0 0.0
    %1143 = vmatprep.subr.mxu0 0.0
    %1144 = vmatpush1.msra.mxu0 0.0
    %1145 = vmatprep.subr.mxu0 0.0
    %1146 = vmatpush1.msra.mxu0 0.0
    %1147 = vmatprep.subr.mxu0 0.0
    %1148 = vmatpush1.msra.mxu0 0.0
    %1149 = vmatprep.subr.mxu0 0.0
    %1150 = vmatpush1.msra.mxu0 0.0
    %1151 = vmatprep.subr.mxu0 0.0
    %1152 = vmatpush1.msra.mxu0 0.0
    %1153 = vmatprep.subr.mxu0 0.0
    %1154 = vmatpush1.msra.mxu0 0.0
    %1155 = vmatprep.subr.mxu0 0.0
    %1156 = vmatpush1.msra.mxu0 0.0
    %1157 = vmatprep.subr.mxu0 0.0
    %1158 = vmatpush1.msra.mxu0 0.0
    %1159 = vmatprep.subr.mxu0 0.0
    %1160 = vmatpush1.msra.mxu0 0.0
    %1161 = vmatprep.subr.mxu0 0.0
    %1162 = vmatpush1.msra.mxu0 0.0
    %1163 = vmatprep.subr.mxu0 0.0
    %1164 = vmatpush1.msra.mxu0 0.0
    %1165 = vmatprep.subr.mxu0 0.0
    %1166 = vmatpush1.msra.mxu0 0.0
    %1167 = vmatprep.subr.mxu0 0.0
    %1168 = vmatpush1.msra.mxu0 0.0
    %1169 = vmatprep.subr.mxu0 0.0
    %1170 = vmatpush1.msra.mxu0 0.0
    %1171 = vmatprep.subr.mxu0 0.0
    %1172 = vmatpush1.msra.mxu0 0.0
    %1173 = vmatprep.subr.mxu0 0.0
    %1174 = vmatpush1.msra.mxu0 0.0
    %1175 = vmatprep.subr.mxu0 0.0
    %1176 = vmatpush1.msra.mxu0 0.0
    %1177 = vmatprep.subr.mxu0 0.0
    %1178 = vmatpush1.msra.mxu0 0.0
    %1179 = vmatprep.subr.mxu0 0.0
    %1180 = vmatpush1.msra.mxu0 0.0
    %1181 = vmatprep.subr.mxu0 0.0
    %1182 = vmatpush1.msra.mxu0 0.0
    %1183 = vmatprep.subr.mxu0 0.0
    %1184 = vmatpush1.msra.mxu0 0.0
    %1185 = vmatprep.subr.mxu0 0.0
    %1186 = vmatpush1.msra.mxu0 0.0
    %1187 = vmatprep.subr.mxu0 0.0
    %1188 = vmatpush1.msra.mxu0 0.0
    %1189 = vmatprep.subr.mxu0 0.0
    %1190 = vmatpush1.msra.mxu0 0.0
    %1191 = vmatprep.subr.mxu0 0.0
    %1192 = vmatpush1.msra.mxu0 0.0
    %1193 = vmatprep.subr.mxu0 0.0
    %1194 = vmatpush1.msra.mxu0 0.0
    %1195 = vmatprep.mubr.f32.mxu0 0.0
    %1196 = vmatmul.mubr.f32.gmra.mrb[0].mxu0 %v1129
    %v1197 = vpop.f32.mrb[0].mxu0
    %v1198 = vadd.f32 0.0, %v1197
    %v1199 = vpop.f32.mrb[0].mxu0
    %1200 = vdwg.mxu0
    %v1201 = vadd.f32 %v1125, %v1198
    %v1202 = vtanh.pop %v1201
    %v1203 = vxor.u32 %v1201, 2147483648
    %v1204 = vmul.f32 %v1203, 1.442695
    %v1205 = vpow.pop %v1204
    %v1206 = vadd.f32 %v1205, 1.0
    %v1207 = vrcp.pop %v1206
    %v1208 = vmul.f32 1.0, %v1207
    %v1209 = vsel %vm1019, %v1202, %v1208
    %v1210 = vmul.f32 %v1209, %v1117
    %1212 = vrot.lane.b32.xlu0 %v1209, 64
    %v1213 = vpop.permute.xlu0 %1212
    %v1215 = vmul.f32 %v1209, %v1213
    %1217 = vrot.lane.b32.xlu0 %v1215, 32
    %v1218 = vpop.permute.xlu0 %1217
    %v1220 = vadd.f32 %v1210, %v1218
    %v1221 = vtanh.pop %v1220
    %1223 = vrot.lane.b32.xlu0 %v1221, 64
    %v1224 = vpop.permute.xlu0 %1223
    %v1226 = vmul.f32 %v1209, %v1224
    %s1227 = scalar_lea.vmem [#allocation2], 16
    %v1228 = vld [vmem:[%s1227] sm:$0xff]
    %1230 = vrot.lane.b32.xlu0 %v1226, 32
    %v1231 = vpop.permute.xlu0 %1230
    %v1232 = vsel %vm1025, %v1231, 0
    %1234 = vmatprep.subr.mxu0 0.0
    %1235 = vmatpush1.msra.mxu0 %v1020
    %1236 = vmatprep.subr.mxu0 0.0
    %1237 = vmatpush1.msra.mxu0 %v1021
    %1238 = vmatprep.subr.mxu0 0.0
    %1239 = vmatpush1.msra.mxu0 %v1022
    %1240 = vmatprep.subr.mxu0 0.0
    %1241 = vmatpush1.msra.mxu0 %v1023
    %1242 = vmatprep.subr.mxu0 0.0
    %1243 = vmatpush1.msra.mxu0 0.0
    %1244 = vmatprep.subr.mxu0 0.0
    %1245 = vmatpush1.msra.mxu0 0.0
    %1246 = vmatprep.subr.mxu0 0.0
    %1247 = vmatpush1.msra.mxu0 0.0
    %1248 = vmatprep.subr.mxu0 0.0
    %1249 = vmatpush1.msra.mxu0 0.0
    %1250 = vmatprep.subr.mxu0 0.0
    %1251 = vmatpush1.msra.mxu0 0.0
    %1252 = vmatprep.subr.mxu0 0.0
    %1253 = vmatpush1.msra.mxu0 0.0
    %1254 = vmatprep.subr.mxu0 0.0
    %1255 = vmatpush1.msra.mxu0 0.0
    %1256 = vmatprep.subr.mxu0 0.0
    %1257 = vmatpush1.msra.mxu0 0.0
    %1258 = vmatprep.subr.mxu0 0.0
    %1259 = vmatpush1.msra.mxu0 0.0
    %1260 = vmatprep.subr.mxu0 0.0
    %1261 = vmatpush1.msra.mxu0 0.0
    %1262 = vmatprep.subr.mxu0 0.0
    %1263 = vmatpush1.msra.mxu0 0.0
    %1264 = vmatprep.subr.mxu0 0.0
    %1265 = vmatpush1.msra.mxu0 0.0
    %1266 = vmatprep.subr.mxu0 0.0
    %1267 = vmatpush1.msra.mxu0 0.0
    %1268 = vmatprep.subr.mxu0 0.0
    %1269 = vmatpush1.msra.mxu0 0.0
    %1270 = vmatprep.subr.mxu0 0.0
    %1271 = vmatpush1.msra.mxu0 0.0
    %1272 = vmatprep.subr.mxu0 0.0
    %1273 = vmatpush1.msra.mxu0 0.0
    %1274 = vmatprep.subr.mxu0 0.0
    %1275 = vmatpush1.msra.mxu0 0.0
    %1276 = vmatprep.subr.mxu0 0.0
    %1277 = vmatpush1.msra.mxu0 0.0
    %1278 = vmatprep.subr.mxu0 0.0
    %1279 = vmatpush1.msra.mxu0 0.0
    %1280 = vmatprep.subr.mxu0 0.0
    %1281 = vmatpush1.msra.mxu0 0.0
    %1282 = vmatprep.subr.mxu0 0.0
    %1283 = vmatpush1.msra.mxu0 0.0
    %1284 = vmatprep.subr.mxu0 0.0
    %1285 = vmatpush1.msra.mxu0 0.0
    %1286 = vmatprep.subr.mxu0 0.0
    %1287 = vmatpush1.msra.mxu0 0.0
    %1288 = vmatprep.subr.mxu0 0.0
    %1289 = vmatpush1.msra.mxu0 0.0
    %1290 = vmatprep.subr.mxu0 0.0
    %1291 = vmatpush1.msra.mxu0 0.0
    %1292 = vmatprep.subr.mxu0 0.0
    %1293 = vmatpush1.msra.mxu0 0.0
    %1294 = vmatprep.subr.mxu0 0.0
    %1295 = vmatpush1.msra.mxu0 0.0
    %1296 = vmatprep.subr.mxu0 0.0
    %1297 = vmatpush1.msra.mxu0 0.0
    %1298 = vmatprep.mubr.f32.mxu0 0.0
    %1299 = vmatmul.mubr.f32.gmra.mrb[0].mxu0 %v1232
    %v1300 = vpop.f32.mrb[0].mxu0
    %v1301 = vadd.f32 0.0, %v1300
    %v1302 = vpop.f32.mrb[0].mxu0
    %1303 = vdwg.mxu0
    %v1304 = vadd.f32 %v1228, %v1301
    %v1305 = vtanh.pop %v1304
    %v1306 = vxor.u32 %v1304, 2147483648
    %v1307 = vmul.f32 %v1306, 1.442695
    %v1308 = vpow.pop %v1307
    %v1309 = vadd.f32 %v1308, 1.0
    %v1310 = vrcp.pop %v1309
    %v1311 = vmul.f32 1.0, %v1310
    %v1312 = vsel %vm1019, %v1305, %v1311
    %v1313 = vmul.f32 %v1312, %v1220
    %1315 = vrot.lane.b32.xlu0 %v1312, 64
    %v1316 = vpop.permute.xlu0 %1315
    %v1318 = vmul.f32 %v1312, %v1316
    %1320 = vrot.lane.b32.xlu0 %v1318, 32
    %v1321 = vpop.permute.xlu0 %1320
    %v1323 = vadd.f32 %v1313, %v1321
    %v1324 = vtanh.pop %v1323
    %1326 = vrot.lane.b32.xlu0 %v1324, 64
    %v1327 = vpop.permute.xlu0 %1326
    %v1329 = vmul.f32 %v1312, %v1327
    %s1330 = scalar_lea.vmem [#allocation2], 24
    %v1331 = vld [vmem:[%s1330] sm:$0xff]
    %1333 = vrot.lane.b32.xlu0 %v1329, 32
    %v1334 = vpop.permute.xlu0 %1333
    %v1335 = vsel %vm1025, %v1334, 0
    %1337 = vmatprep.subr.mxu0 0.0
    %1338 = vmatpush1.msra.mxu0 %v1020
    %1339 = vmatprep.subr.mxu0 0.0
    %1340 = vmatpush1.msra.mxu0 %v1021
    %1341 = vmatprep.subr.mxu0 0.0
    %1342 = vmatpush1.msra.mxu0 %v1022
    %1343 = vmatprep.subr.mxu0 0.0
    %1344 = vmatpush1.msra.mxu0 %v1023
    %1345 = vmatprep.subr.mxu0 0.0
    %1346 = vmatpush1.msra.mxu0 0.0
    %1347 = vmatprep.subr.mxu0 0.0
    %1348 = vmatpush1.msra.mxu0 0.0
    %1349 = vmatprep.subr.mxu0 0.0
    %1350 = vmatpush1.msra.mxu0 0.0
    %1351 = vmatprep.subr.mxu0 0.0
    %1352 = vmatpush1.msra.mxu0 0.0
    %1353 = vmatprep.subr.mxu0 0.0
    %1354 = vmatpush1.msra.mxu0 0.0
    %1355 = vmatprep.subr.mxu0 0.0
    %1356 = vmatpush1.msra.mxu0 0.0
    %1357 = vmatprep.subr.mxu0 0.0
    %1358 = vmatpush1.msra.mxu0 0.0
    %1359 = vmatprep.subr.mxu0 0.0
    %1360 = vmatpush1.msra.mxu0 0.0
    %1361 = vmatprep.subr.mxu0 0.0
    %1362 = vmatpush1.msra.mxu0 0.0
    %1363 = vmatprep.subr.mxu0 0.0
    %1364 = vmatpush1.msra.mxu0 0.0
    %1365 = vmatprep.subr.mxu0 0.0
    %1366 = vmatpush1.msra.mxu0 0.0
    %1367 = vmatprep.subr.mxu0 0.0
    %1368 = vmatpush1.msra.mxu0 0.0
    %1369 = vmatprep.subr.mxu0 0.0
    %1370 = vmatpush1.msra.mxu0 0.0
    %1371 = vmatprep.subr.mxu0 0.0
    %1372 = vmatpush1.msra.mxu0 0.0
    %1373 = vmatprep.subr.mxu0 0.0
    %1374 = vmatpush1.msra.mxu0 0.0
    %1375 = vmatprep.subr.mxu0 0.0
    %1376 = vmatpush1.msra.mxu0 0.0
    %1377 = vmatprep.subr.mxu0 0.0
    %1378 = vmatpush1.msra.mxu0 0.0
    %1379 = vmatprep.subr.mxu0 0.0
    %1380 = vmatpush1.msra.mxu0 0.0
    %1381 = vmatprep.subr.mxu0 0.0
    %1382 = vmatpush1.msra.mxu0 0.0
    %1383 = vmatprep.subr.mxu0 0.0
    %1384 = vmatpush1.msra.mxu0 0.0
    %1385 = vmatprep.subr.mxu0 0.0
    %1386 = vmatpush1.msra.mxu0 0.0
    %1387 = vmatprep.subr.mxu0 0.0
    %1388 = vmatpush1.msra.mxu0 0.0
    %1389 = vmatprep.subr.mxu0 0.0
    %1390 = vmatpush1.msra.mxu0 0.0
    %1391 = vmatprep.subr.mxu0 0.0
    %1392 = vmatpush1.msra.mxu0 0.0
    %1393 = vmatprep.subr.mxu0 0.0
    %1394 = vmatpush1.msra.mxu0 0.0
    %1395 = vmatprep.subr.mxu0 0.0
    %1396 = vmatpush1.msra.mxu0 0.0
    %1397 = vmatprep.subr.mxu0 0.0
    %1398 = vmatpush1.msra.mxu0 0.0
    %1399 = vmatprep.subr.mxu0 0.0
    %1400 = vmatpush1.msra.mxu0 0.0
    %1401 = vmatprep.mubr.f32.mxu0 0.0
    %1402 = vmatmul.mubr.f32.gmra.mrb[0].mxu0 %v1335
    %v1403 = vpop.f32.mrb[0].mxu0
    %v1404 = vadd.f32 0.0, %v1403
    %v1405 = vpop.f32.mrb[0].mxu0
    %1406 = vdwg.mxu0
    %v1407 = vadd.f32 %v1331, %v1404
    %v1408 = vtanh.pop %v1407
    %v1409 = vxor.u32 %v1407, 2147483648
    %v1410 = vmul.f32 %v1409, 1.442695
    %v1411 = vpow.pop %v1410
    %v1412 = vadd.f32 %v1411, 1.0
    %v1413 = vrcp.pop %v1412
    %v1414 = vmul.f32 1.0, %v1413
    %v1415 = vsel %vm1019, %v1408, %v1414
    %v1416 = vmul.f32 %v1415, %v1323
    %1418 = vrot.lane.b32.xlu0 %v1415, 64
    %v1419 = vpop.permute.xlu0 %1418
    %v1421 = vmul.f32 %v1415, %v1419
    %1423 = vrot.lane.b32.xlu0 %v1421, 32
    %v1424 = vpop.permute.xlu0 %1423
    %v1426 = vadd.f32 %v1416, %v1424
    %v1427 = vtanh.pop %v1426
    %1429 = vrot.lane.b32.xlu0 %v1427, 64
    %v1430 = vpop.permute.xlu0 %1429
    %v1432 = vmul.f32 %v1415, %v1430
    %s1433 = scalar_lea.vmem [#allocation2], 32
    %v1434 = vld [vmem:[%s1433] sm:$0xff]
    %1436 = vrot.lane.b32.xlu0 %v1432, 32
    %v1437 = vpop.permute.xlu0 %1436
    %v1438 = vsel %vm1025, %v1437, 0
    %1440 = vmatprep.subr.mxu0 0.0
    %1441 = vmatpush1.msra.mxu0 %v1020
    %1442 = vmatprep.subr.mxu0 0.0
    %1443 = vmatpush1.msra.mxu0 %v1021
    %1444 = vmatprep.subr.mxu0 0.0
    %1445 = vmatpush1.msra.mxu0 %v1022
    %1446 = vmatprep.subr.mxu0 0.0
    %1447 = vmatpush1.msra.mxu0 %v1023
    %1448 = vmatprep.subr.mxu0 0.0
    %1449 = vmatpush1.msra.mxu0 0.0
    %1450 = vmatprep.subr.mxu0 0.0
    %1451 = vmatpush1.msra.mxu0 0.0
    %1452 = vmatprep.subr.mxu0 0.0
    %1453 = vmatpush1.msra.mxu0 0.0
    %1454 = vmatprep.subr.mxu0 0.0
    %1455 = vmatpush1.msra.mxu0 0.0
    %1456 = vmatprep.subr.mxu0 0.0
    %1457 = vmatpush1.msra.mxu0 0.0
    %1458 = vmatprep.subr.mxu0 0.0
    %1459 = vmatpush1.msra.mxu0 0.0
    %1460 = vmatprep.subr.mxu0 0.0
    %1461 = vmatpush1.msra.mxu0 0.0
    %1462 = vmatprep.subr.mxu0 0.0
    %1463 = vmatpush1.msra.mxu0 0.0
    %1464 = vmatprep.subr.mxu0 0.0
    %1465 = vmatpush1.msra.mxu0 0.0
    %1466 = vmatprep.subr.mxu0 0.0
    %1467 = vmatpush1.msra.mxu0 0.0
    %1468 = vmatprep.subr.mxu0 0.0
    %1469 = vmatpush1.msra.mxu0 0.0
    %1470 = vmatprep.subr.mxu0 0.0
    %1471 = vmatpush1.msra.mxu0 0.0
    %1472 = vmatprep.subr.mxu0 0.0
    %1473 = vmatpush1.msra.mxu0 0.0
    %1474 = vmatprep.subr.mxu0 0.0
    %1475 = vmatpush1.msra.mxu0 0.0
    %1476 = vmatprep.subr.mxu0 0.0
    %1477 = vmatpush1.msra.mxu0 0.0
    %1478 = vmatprep.subr.mxu0 0.0
    %1479 = vmatpush1.msra.mxu0 0.0
    %1480 = vmatprep.subr.mxu0 0.0
    %1481 = vmatpush1.msra.mxu0 0.0
    %1482 = vmatprep.subr.mxu0 0.0
    %1483 = vmatpush1.msra.mxu0 0.0
    %1484 = vmatprep.subr.mxu0 0.0
    %1485 = vmatpush1.msra.mxu0 0.0
    %1486 = vmatprep.subr.mxu0 0.0
    %1487 = vmatpush1.msra.mxu0 0.0
    %1488 = vmatprep.subr.mxu0 0.0
    %1489 = vmatpush1.msra.mxu0 0.0
    %1490 = vmatprep.subr.mxu0 0.0
    %1491 = vmatpush1.msra.mxu0 0.0
    %1492 = vmatprep.subr.mxu0 0.0
    %1493 = vmatpush1.msra.mxu0 0.0
    %1494 = vmatprep.subr.mxu0 0.0
    %1495 = vmatpush1.msra.mxu0 0.0
    %1496 = vmatprep.subr.mxu0 0.0
    %1497 = vmatpush1.msra.mxu0 0.0
    %1498 = vmatprep.subr.mxu0 0.0
    %1499 = vmatpush1.msra.mxu0 0.0
    %1500 = vmatprep.subr.mxu0 0.0
    %1501 = vmatpush1.msra.mxu0 0.0
    %1502 = vmatprep.subr.mxu0 0.0
    %1503 = vmatpush1.msra.mxu0 0.0
    %1504 = vmatprep.mubr.f32.mxu0 0.0
    %1505 = vmatmul.mubr.f32.gmra.mrb[0].mxu0 %v1438
    %v1506 = vpop.f32.mrb[0].mxu0
    %v1507 = vadd.f32 0.0, %v1506
    %v1508 = vpop.f32.mrb[0].mxu0
    %1509 = vdwg.mxu0
    %v1510 = vadd.f32 %v1434, %v1507
    %v1511 = vtanh.pop %v1510
    %v1512 = vxor.u32 %v1510, 2147483648
    %v1513 = vmul.f32 %v1512, 1.442695
    %v1514 = vpow.pop %v1513
    %v1515 = vadd.f32 %v1514, 1.0
    %v1516 = vrcp.pop %v1515
    %v1517 = vmul.f32 1.0, %v1516
    %v1518 = vsel %vm1019, %v1511, %v1517
    %v1519 = vmul.f32 %v1518, %v1426
    %1521 = vrot.lane.b32.xlu0 %v1518, 64
    %v1522 = vpop.permute.xlu0 %1521
    %v1524 = vmul.f32 %v1518, %v1522
    %1526 = vrot.lane.b32.xlu0 %v1524, 32
    %v1527 = vpop.permute.xlu0 %1526
    %v1529 = vadd.f32 %v1519, %v1527
    %v1530 = vtanh.pop %v1529
    %1532 = vrot.lane.b32.xlu0 %v1530, 64
    %v1533 = vpop.permute.xlu0 %1532
    %v1535 = vmul.f32 %v1518, %v1533
    %s1536 = scalar_lea.vmem [#allocation2], 40
    %v1537 = vld [vmem:[%s1536] sm:$0xff]
    %1539 = vrot.lane.b32.xlu0 %v1535, 32
    %v1540 = vpop.permute.xlu0 %1539
    %v1541 = vsel %vm1025, %v1540, 0
    %1543 = vmatprep.subr.mxu0 0.0
    %1544 = vmatpush1.msra.mxu0 %v1020
    %1545 = vmatprep.subr.mxu0 0.0
    %1546 = vmatpush1.msra.mxu0 %v1021
    %1547 = vmatprep.subr.mxu0 0.0
    %1548 = vmatpush1.msra.mxu0 %v1022
    %1549 = vmatprep.subr.mxu0 0.0
    %1550 = vmatpush1.msra.mxu0 %v1023
    %1551 = vmatprep.subr.mxu0 0.0
    %1552 = vmatpush1.msra.mxu0 0.0
    %1553 = vmatprep.subr.mxu0 0.0
    %1554 = vmatpush1.msra.mxu0 0.0
    %1555 = vmatprep.subr.mxu0 0.0
    %1556 = vmatpush1.msra.mxu0 0.0
    %1557 = vmatprep.subr.mxu0 0.0
    %1558 = vmatpush1.msra.mxu0 0.0
    %1559 = vmatprep.subr.mxu0 0.0
    %1560 = vmatpush1.msra.mxu0 0.0
    %1561 = vmatprep.subr.mxu0 0.0
    %1562 = vmatpush1.msra.mxu0 0.0
    %1563 = vmatprep.subr.mxu0 0.0
    %1564 = vmatpush1.msra.mxu0 0.0
    %1565 = vmatprep.subr.mxu0 0.0
    %1566 = vmatpush1.msra.mxu0 0.0
    %1567 = vmatprep.subr.mxu0 0.0
    %1568 = vmatpush1.msra.mxu0 0.0
    %1569 = vmatprep.subr.mxu0 0.0
    %1570 = vmatpush1.msra.mxu0 0.0
    %1571 = vmatprep.subr.mxu0 0.0
    %1572 = vmatpush1.msra.mxu0 0.0
    %1573 = vmatprep.subr.mxu0 0.0
    %1574 = vmatpush1.msra.mxu0 0.0
    %1575 = vmatprep.subr.mxu0 0.0
    %1576 = vmatpush1.msra.mxu0 0.0
    %1577 = vmatprep.subr.mxu0 0.0
    %1578 = vmatpush1.msra.mxu0 0.0
    %1579 = vmatprep.subr.mxu0 0.0
    %1580 = vmatpush1.msra.mxu0 0.0
    %1581 = vmatprep.subr.mxu0 0.0
    %1582 = vmatpush1.msra.mxu0 0.0
    %1583 = vmatprep.subr.mxu0 0.0
    %1584 = vmatpush1.msra.mxu0 0.0
    %1585 = vmatprep.subr.mxu0 0.0
    %1586 = vmatpush1.msra.mxu0 0.0
    %1587 = vmatprep.subr.mxu0 0.0
    %1588 = vmatpush1.msra.mxu0 0.0
    %1589 = vmatprep.subr.mxu0 0.0
    %1590 = vmatpush1.msra.mxu0 0.0
    %1591 = vmatprep.subr.mxu0 0.0
    %1592 = vmatpush1.msra.mxu0 0.0
    %1593 = vmatprep.subr.mxu0 0.0
    %1594 = vmatpush1.msra.mxu0 0.0
    %1595 = vmatprep.subr.mxu0 0.0
    %1596 = vmatpush1.msra.mxu0 0.0
    %1597 = vmatprep.subr.mxu0 0.0
    %1598 = vmatpush1.msra.mxu0 0.0
    %1599 = vmatprep.subr.mxu0 0.0
    %1600 = vmatpush1.msra.mxu0 0.0
    %1601 = vmatprep.subr.mxu0 0.0
    %1602 = vmatpush1.msra.mxu0 0.0
    %1603 = vmatprep.subr.mxu0 0.0
    %1604 = vmatpush1.msra.mxu0 0.0
    %1605 = vmatprep.subr.mxu0 0.0
    %1606 = vmatpush1.msra.mxu0 0.0
    %1607 = vmatprep.mubr.f32.mxu0 0.0
    %1608 = vmatmul.mubr.f32.gmra.mrb[0].mxu0 %v1541
    %v1609 = vpop.f32.mrb[0].mxu0
    %v1610 = vadd.f32 0.0, %v1609
    %v1611 = vpop.f32.mrb[0].mxu0
    %1612 = vdwg.mxu0
    %v1613 = vadd.f32 %v1537, %v1610
    %v1614 = vtanh.pop %v1613
    %v1615 = vxor.u32 %v1613, 2147483648
    %v1616 = vmul.f32 %v1615, 1.442695
    %v1617 = vpow.pop %v1616
    %v1618 = vadd.f32 %v1617, 1.0
    %v1619 = vrcp.pop %v1618
    %v1620 = vmul.f32 1.0, %v1619
    %v1621 = vsel %vm1019, %v1614, %v1620
    %v1622 = vmul.f32 %v1621, %v1529
    %1624 = vrot.lane.b32.xlu0 %v1621, 64
    %v1625 = vpop.permute.xlu0 %1624
    %v1627 = vmul.f32 %v1621, %v1625
    %1629 = vrot.lane.b32.xlu0 %v1627, 32
    %v1630 = vpop.permute.xlu0 %1629
    %v1632 = vadd.f32 %v1622, %v1630
    %v1633 = vtanh.pop %v1632
    %1635 = vrot.lane.b32.xlu0 %v1633, 64
    %v1636 = vpop.permute.xlu0 %1635
    %v1638 = vmul.f32 %v1621, %v1636
    %s1639 = scalar_lea.vmem [#allocation2], 48
    %v1640 = vld [vmem:[%s1639] sm:$0xff]
    %1642 = vrot.lane.b32.xlu0 %v1638, 32
    %v1643 = vpop.permute.xlu0 %1642
    %v1644 = vsel %vm1025, %v1643, 0
    %1646 = vmatprep.subr.mxu0 0.0
    %1647 = vmatpush1.msra.mxu0 %v1020
    %1648 = vmatprep.subr.mxu0 0.0
    %1649 = vmatpush1.msra.mxu0 %v1021
    %1650 = vmatprep.subr.mxu0 0.0
    %1651 = vmatpush1.msra.mxu0 %v1022
    %1652 = vmatprep.subr.mxu0 0.0
    %1653 = vmatpush1.msra.mxu0 %v1023
    %1654 = vmatprep.subr.mxu0 0.0
    %1655 = vmatpush1.msra.mxu0 0.0
    %1656 = vmatprep.subr.mxu0 0.0
    %1657 = vmatpush1.msra.mxu0 0.0
    %1658 = vmatprep.subr.mxu0 0.0
    %1659 = vmatpush1.msra.mxu0 0.0
    %1660 = vmatprep.subr.mxu0 0.0
    %1661 = vmatpush1.msra.mxu0 0.0
    %1662 = vmatprep.subr.mxu0 0.0
    %1663 = vmatpush1.msra.mxu0 0.0
    %1664 = vmatprep.subr.mxu0 0.0
    %1665 = vmatpush1.msra.mxu0 0.0
    %1666 = vmatprep.subr.mxu0 0.0
    %1667 = vmatpush1.msra.mxu0 0.0
    %1668 = vmatprep.subr.mxu0 0.0
    %1669 = vmatpush1.msra.mxu0 0.0
    %1670 = vmatprep.subr.mxu0 0.0
    %1671 = vmatpush1.msra.mxu0 0.0
    %1672 = vmatprep.subr.mxu0 0.0
    %1673 = vmatpush1.msra.mxu0 0.0
    %1674 = vmatprep.subr.mxu0 0.0
    %1675 = vmatpush1.msra.mxu0 0.0
    %1676 = vmatprep.subr.mxu0 0.0
    %1677 = vmatpush1.msra.mxu0 0.0
    %1678 = vmatprep.subr.mxu0 0.0
    %1679 = vmatpush1.msra.mxu0 0.0
    %1680 = vmatprep.subr.mxu0 0.0
    %1681 = vmatpush1.msra.mxu0 0.0
    %1682 = vmatprep.subr.mxu0 0.0
    %1683 = vmatpush1.msra.mxu0 0.0
    %1684 = vmatprep.subr.mxu0 0.0
    %1685 = vmatpush1.msra.mxu0 0.0
    %1686 = vmatprep.subr.mxu0 0.0
    %1687 = vmatpush1.msra.mxu0 0.0
    %1688 = vmatprep.subr.mxu0 0.0
    %1689 = vmatpush1.msra.mxu0 0.0
    %1690 = vmatprep.subr.mxu0 0.0
    %1691 = vmatpush1.msra.mxu0 0.0
    %1692 = vmatprep.subr.mxu0 0.0
    %1693 = vmatpush1.msra.mxu0 0.0
    %1694 = vmatprep.subr.mxu0 0.0
    %1695 = vmatpush1.msra.mxu0 0.0
    %1696 = vmatprep.subr.mxu0 0.0
    %1697 = vmatpush1.msra.mxu0 0.0
    %1698 = vmatprep.subr.mxu0 0.0
    %1699 = vmatpush1.msra.mxu0 0.0
    %1700 = vmatprep.subr.mxu0 0.0
    %1701 = vmatpush1.msra.mxu0 0.0
    %1702 = vmatprep.subr.mxu0 0.0
    %1703 = vmatpush1.msra.mxu0 0.0
    %1704 = vmatprep.subr.mxu0 0.0
    %1705 = vmatpush1.msra.mxu0 0.0
    %1706 = vmatprep.subr.mxu0 0.0
    %1707 = vmatpush1.msra.mxu0 0.0
    %1708 = vmatprep.subr.mxu0 0.0
    %1709 = vmatpush1.msra.mxu0 0.0
    %1710 = vmatprep.mubr.f32.mxu0 0.0
    %1711 = vmatmul.mubr.f32.gmra.mrb[0].mxu0 %v1644
    %v1712 = vpop.f32.mrb[0].mxu0
    %v1713 = vadd.f32 0.0, %v1712
    %v1714 = vpop.f32.mrb[0].mxu0
    %1715 = vdwg.mxu0
    %v1716 = vadd.f32 %v1640, %v1713
    %v1717 = vtanh.pop %v1716
    %v1718 = vxor.u32 %v1716, 2147483648
    %v1719 = vmul.f32 %v1718, 1.442695
    %v1720 = vpow.pop %v1719
    %v1721 = vadd.f32 %v1720, 1.0
    %v1722 = vrcp.pop %v1721
    %v1723 = vmul.f32 1.0, %v1722
    %v1724 = vsel %vm1019, %v1717, %v1723
    %v1725 = vmul.f32 %v1724, %v1632
    %1727 = vrot.lane.b32.xlu0 %v1724, 64
    %v1728 = vpop.permute.xlu0 %1727
    %v1730 = vmul.f32 %v1724, %v1728
    %1732 = vrot.lane.b32.xlu0 %v1730, 32
    %v1733 = vpop.permute.xlu0 %1732
    %v1735 = vadd.f32 %v1725, %v1733
    %v1736 = vtanh.pop %v1735
    %1738 = vrot.lane.b32.xlu0 %v1736, 64
    %v1739 = vpop.permute.xlu0 %1738
    %v1741 = vmul.f32 %v1724, %v1739
    %s1742 = scalar_lea.vmem [#allocation2], 56
    %v1743 = vld [vmem:[%s1742] sm:$0xff]
    %1745 = vrot.lane.b32.xlu0 %v1741, 32
    %v1746 = vpop.permute.xlu0 %1745
    %v1747 = vsel %vm1025, %v1746, 0
    %1749 = vmatprep.subr.mxu0 0.0
    %1750 = vmatpush1.msra.mxu0 %v1020
    %1751 = vmatprep.subr.mxu0 0.0
    %1752 = vmatpush1.msra.mxu0 %v1021
    %1753 = vmatprep.subr.mxu0 0.0
    %1754 = vmatpush1.msra.mxu0 %v1022
    %1755 = vmatprep.subr.mxu0 0.0
    %1756 = vmatpush1.msra.mxu0 %v1023
    %1757 = vmatprep.subr.mxu0 0.0
    %1758 = vmatpush1.msra.mxu0 0.0
    %1759 = vmatprep.subr.mxu0 0.0
    %1760 = vmatpush1.msra.mxu0 0.0
    %1761 = vmatprep.subr.mxu0 0.0
    %1762 = vmatpush1.msra.mxu0 0.0
    %1763 = vmatprep.subr.mxu0 0.0
    %1764 = vmatpush1.msra.mxu0 0.0
    %1765 = vmatprep.subr.mxu0 0.0
    %1766 = vmatpush1.msra.mxu0 0.0
    %1767 = vmatprep.subr.mxu0 0.0
    %1768 = vmatpush1.msra.mxu0 0.0
    %1769 = vmatprep.subr.mxu0 0.0
    %1770 = vmatpush1.msra.mxu0 0.0
    %1771 = vmatprep.subr.mxu0 0.0
    %1772 = vmatpush1.msra.mxu0 0.0
    %1773 = vmatprep.subr.mxu0 0.0
    %1774 = vmatpush1.msra.mxu0 0.0
    %1775 = vmatprep.subr.mxu0 0.0
    %1776 = vmatpush1.msra.mxu0 0.0
    %1777 = vmatprep.subr.mxu0 0.0
    %1778 = vmatpush1.msra.mxu0 0.0
    %1779 = vmatprep.subr.mxu0 0.0
    %1780 = vmatpush1.msra.mxu0 0.0
    %1781 = vmatprep.subr.mxu0 0.0
    %1782 = vmatpush1.msra.mxu0 0.0
    %1783 = vmatprep.subr.mxu0 0.0
    %1784 = vmatpush1.msra.mxu0 0.0
    %1785 = vmatprep.subr.mxu0 0.0
    %1786 = vmatpush1.msra.mxu0 0.0
    %1787 = vmatprep.subr.mxu0 0.0
    %1788 = vmatpush1.msra.mxu0 0.0
    %1789 = vmatprep.subr.mxu0 0.0
    %1790 = vmatpush1.msra.mxu0 0.0
    %1791 = vmatprep.subr.mxu0 0.0
    %1792 = vmatpush1.msra.mxu0 0.0
    %1793 = vmatprep.subr.mxu0 0.0
    %1794 = vmatpush1.msra.mxu0 0.0
    %1795 = vmatprep.subr.mxu0 0.0
    %1796 = vmatpush1.msra.mxu0 0.0
    %1797 = vmatprep.subr.mxu0 0.0
    %1798 = vmatpush1.msra.mxu0 0.0
    %1799 = vmatprep.subr.mxu0 0.0
    %1800 = vmatpush1.msra.mxu0 0.0
    %1801 = vmatprep.subr.mxu0 0.0
    %1802 = vmatpush1.msra.mxu0 0.0
    %1803 = vmatprep.subr.mxu0 0.0
    %1804 = vmatpush1.msra.mxu0 0.0
    %1805 = vmatprep.subr.mxu0 0.0
    %1806 = vmatpush1.msra.mxu0 0.0
    %1807 = vmatprep.subr.mxu0 0.0
    %1808 = vmatpush1.msra.mxu0 0.0
    %1809 = vmatprep.subr.mxu0 0.0
    %1810 = vmatpush1.msra.mxu0 0.0
    %1811 = vmatprep.subr.mxu0 0.0
    %1812 = vmatpush1.msra.mxu0 0.0
    %1813 = vmatprep.mubr.f32.mxu0 0.0
    %1814 = vmatmul.mubr.f32.gmra.mrb[0].mxu0 %v1747
    %v1815 = vpop.f32.mrb[0].mxu0
    %v1816 = vadd.f32 0.0, %v1815
    %v1817 = vpop.f32.mrb[0].mxu0
    %1818 = vdwg.mxu0
    %v1819 = vadd.f32 %v1743, %v1816
    %v1820 = vtanh.pop %v1819
    %v1821 = vxor.u32 %v1819, 2147483648
    %v1822 = vmul.f32 %v1821, 1.442695
    %v1823 = vpow.pop %v1822
    %v1824 = vadd.f32 %v1823, 1.0
    %v1825 = vrcp.pop %v1824
    %v1826 = vmul.f32 1.0, %v1825
    %v1827 = vsel %vm1019, %v1820, %v1826
    %v1828 = vmul.f32 %v1827, %v1735
    %1830 = vrot.lane.b32.xlu0 %v1827, 64
    %v1831 = vpop.permute.xlu0 %1830
    %v1833 = vmul.f32 %v1827, %v1831
    %1835 = vrot.lane.b32.xlu0 %v1833, 32
    %v1836 = vpop.permute.xlu0 %1835
    %v1838 = vadd.f32 %v1828, %v1836
    %v1839 = vtanh.pop %v1838
    %1841 = vrot.lane.b32.xlu0 %v1839, 64
    %v1842 = vpop.permute.xlu0 %1841
    %v1844 = vmul.f32 %v1827, %v1842
    %v1845 = vld [vmem:[#allocation7] sm:$0xff]
    %v1846 = vld [vmem:[#allocation7 + $0x8] sm:$0xff]
    %v1847 = vld [vmem:[#allocation7 + $0x10] sm:$0xff]
    %v1848 = vld [vmem:[#allocation7 + $0x18] sm:$0xff]
    %v1849 = vld [vmem:[#allocation7 + $0x20] sm:$0xff]
    %v1850 = vld [vmem:[#allocation7 + $0x28] sm:$0xff]
    %v1851 = vld [vmem:[#allocation7 + $0x30] sm:$0xff]
    %v1852 = vld [vmem:[#allocation7 + $0x38] sm:$0xff]
    %v1853 = vld [vmem:[#allocation7 + $0x40] sm:$0xff]
    %v1854 = vld [vmem:[#allocation7 + $0x48] sm:$0xff]
    %v1855 = vld [vmem:[#allocation7 + $0x50] sm:$0xff]
    %v1856 = vld [vmem:[#allocation7 + $0x58] sm:$0xff]
    %v1857 = vld [vmem:[#allocation7 + $0x60] sm:$0xff]
    %v1858 = vld [vmem:[#allocation7 + $0x68] sm:$0xff]
    %v1859 = vld [vmem:[#allocation7 + $0x70] sm:$0xff]
    %v1860 = vld [vmem:[#allocation7 + $0x78] sm:$0xff]
    %v1861 = vld [vmem:[%s9] sm:$0x1]
    %v1863 = vlaneseq
    %v1864 = vshrl.u32 %v1863, 7
    %v1865 = vsub.s32 0, %v1864
    %v1866 = vrot.slane %v1861, %v1865
    %1868 = vmatprep.subr.mxu0 0.0
    %1869 = vmatpush1.msra.mxu0 %v1845
    %1870 = vmatprep.subr.mxu0 0.0
    %1871 = vmatpush1.msra.mxu0 %v1846
    %1872 = vmatprep.subr.mxu0 0.0
    %1873 = vmatpush1.msra.mxu0 %v1847
    %1874 = vmatprep.subr.mxu0 0.0
    %1875 = vmatpush1.msra.mxu0 %v1848
    %1876 = vmatprep.subr.mxu0 0.0
    %1877 = vmatpush1.msra.mxu0 %v1849
    %1878 = vmatprep.subr.mxu0 0.0
    %1879 = vmatpush1.msra.mxu0 %v1850
    %1880 = vmatprep.subr.mxu0 0.0
    %1881 = vmatpush1.msra.mxu0 %v1851
    %1882 = vmatprep.subr.mxu0 0.0
    %1883 = vmatpush1.msra.mxu0 %v1852
    %1884 = vmatprep.subr.mxu0 0.0
    %1885 = vmatpush1.msra.mxu0 %v1853
    %1886 = vmatprep.subr.mxu0 0.0
    %1887 = vmatpush1.msra.mxu0 %v1854
    %1888 = vmatprep.subr.mxu0 0.0
    %1889 = vmatpush1.msra.mxu0 %v1855
    %1890 = vmatprep.subr.mxu0 0.0
    %1891 = vmatpush1.msra.mxu0 %v1856
    %1892 = vmatprep.subr.mxu0 0.0
    %1893 = vmatpush1.msra.mxu0 %v1857
    %1894 = vmatprep.subr.mxu0 0.0
    %1895 = vmatpush1.msra.mxu0 %v1858
    %1896 = vmatprep.subr.mxu0 0.0
    %1897 = vmatpush1.msra.mxu0 %v1859
    %1898 = vmatprep.subr.mxu0 0.0
    %1899 = vmatpush1.msra.mxu0 %v1860
    %1900 = vmatprep.subr.mxu0 0.0
    %1901 = vmatpush1.msra.mxu0 0.0
    %1902 = vmatprep.subr.mxu0 0.0
    %1903 = vmatpush1.msra.mxu0 0.0
    %1904 = vmatprep.subr.mxu0 0.0
    %1905 = vmatpush1.msra.mxu0 0.0
    %1906 = vmatprep.subr.mxu0 0.0
    %1907 = vmatpush1.msra.mxu0 0.0
    %1908 = vmatprep.subr.mxu0 0.0
    %1909 = vmatpush1.msra.mxu0 0.0
    %1910 = vmatprep.subr.mxu0 0.0
    %1911 = vmatpush1.msra.mxu0 0.0
    %1912 = vmatprep.subr.mxu0 0.0
    %1913 = vmatpush1.msra.mxu0 0.0
    %1914 = vmatprep.subr.mxu0 0.0
    %1915 = vmatpush1.msra.mxu0 0.0
    %1916 = vmatprep.subr.mxu0 0.0
    %1917 = vmatpush1.msra.mxu0 0.0
    %1918 = vmatprep.subr.mxu0 0.0
    %1919 = vmatpush1.msra.mxu0 0.0
    %1920 = vmatprep.subr.mxu0 0.0
    %1921 = vmatpush1.msra.mxu0 0.0
    %1922 = vmatprep.subr.mxu0 0.0
    %1923 = vmatpush1.msra.mxu0 0.0
    %1924 = vmatprep.subr.mxu0 0.0
    %1925 = vmatpush1.msra.mxu0 0.0
    %1926 = vmatprep.subr.mxu0 0.0
    %1927 = vmatpush1.msra.mxu0 0.0
    %1928 = vmatprep.subr.mxu0 0.0
    %1929 = vmatpush1.msra.mxu0 0.0
    %1930 = vmatprep.subr.mxu0 0.0
    %1931 = vmatpush1.msra.mxu0 0.0
    %1932 = vmatprep.mubr.f32.mxu0 0.0
    %1933 = vmatmul.mubr.f32.gmra.mrb[0].mxu0 %v876
    %v1934 = vpop.f32.mrb[0].mxu0
    %v1935 = vadd.f32 %v1866, %v1934
    %v1936 = vpop.f32.mrb[0].mxu0
    %1937 = vdwg.mxu0
    %v1938 = vtanh.pop %v1935
    %v1939 = vxor.u32 %v1935, 2147483648
    %v1940 = vmul.f32 %v1939, 1.442695
    %v1941 = vpow.pop %v1940
    %v1942 = vadd.f32 %v1941, 1.0
    %v1943 = vrcp.pop %v1942
    %v1944 = vmul.f32 1.0, %v1943
    %v1945 = vsel %vm1019, %v1938, %v1944
    %1947 = vrot.lane.b32.xlu0 %v1945, 64
    %v1948 = vpop.permute.xlu0 %1947
    %v1950 = vmul.f32 %v1945, %v1948
    %v1951 = vtanh.pop %v1950
    %1953 = vrot.lane.b32.xlu0 %v1951, 96
    %v1954 = vpop.permute.xlu0 %1953
    %v1956 = vmul.f32 %v1945, %v1954
    %v1957 = vld [vmem:[%s10] sm:$0xff]
    %v1958 = vld [vmem:[%s10 + $0x8] sm:$0xff]
    %v1959 = vld [vmem:[%s10 + $0x10] sm:$0xff]
    %v1960 = vld [vmem:[%s10 + $0x18] sm:$0xff]
    %v1961 = vld [vmem:[%s11] sm:$0xff]
    %v1962 = vld [vmem:[%s11 + $0x8] sm:$0xff]
    %v1963 = vld [vmem:[%s11 + $0x10] sm:$0xff]
    %v1964 = vld [vmem:[%s11 + $0x18] sm:$0xff]
    %1966 = vrot.lane.b32.xlu0 %v1956, 32
    %v1967 = vpop.permute.xlu0 %1966
    %v1968 = vsel %vm1025, %v1967, 0
    %1970 = vmatprep.subr.mxu0 0.0
    %1971 = vmatpush1.msra.mxu0 %v1961
    %1972 = vmatprep.subr.mxu0 0.0
    %1973 = vmatpush1.msra.mxu0 %v1962
    %1974 = vmatprep.subr.mxu0 0.0
    %1975 = vmatpush1.msra.mxu0 %v1963
    %1976 = vmatprep.subr.mxu0 0.0
    %1977 = vmatpush1.msra.mxu0 %v1964
    %1978 = vmatprep.subr.mxu0 0.0
    %1979 = vmatpush1.msra.mxu0 0.0
    %1980 = vmatprep.subr.mxu0 0.0
    %1981 = vmatpush1.msra.mxu0 0.0
    %1982 = vmatprep.subr.mxu0 0.0
    %1983 = vmatpush1.msra.mxu0 0.0
    %1984 = vmatprep.subr.mxu0 0.0
    %1985 = vmatpush1.msra.mxu0 0.0
    %1986 = vmatprep.subr.mxu0 0.0
    %1987 = vmatpush1.msra.mxu0 0.0
    %1988 = vmatprep.subr.mxu0 0.0
    %1989 = vmatpush1.msra.mxu0 0.0
    %1990 = vmatprep.subr.mxu0 0.0
    %1991 = vmatpush1.msra.mxu0 0.0
    %1992 = vmatprep.subr.mxu0 0.0
    %1993 = vmatpush1.msra.mxu0 0.0
    %1994 = vmatprep.subr.mxu0 0.0
    %1995 = vmatpush1.msra.mxu0 0.0
    %1996 = vmatprep.subr.mxu0 0.0
    %1997 = vmatpush1.msra.mxu0 0.0
    %1998 = vmatprep.subr.mxu0 0.0
    %1999 = vmatpush1.msra.mxu0 0.0
    %2000 = vmatprep.subr.mxu0 0.0
    %2001 = vmatpush1.msra.mxu0 0.0
    %2002 = vmatprep.subr.mxu0 0.0
    %2003 = vmatpush1.msra.mxu0 0.0
    %2004 = vmatprep.subr.mxu0 0.0
    %2005 = vmatpush1.msra.mxu0 0.0
    %2006 = vmatprep.subr.mxu0 0.0
    %2007 = vmatpush1.msra.mxu0 0.0
    %2008 = vmatprep.subr.mxu0 0.0
    %2009 = vmatpush1.msra.mxu0 0.0
    %2010 = vmatprep.subr.mxu0 0.0
    %2011 = vmatpush1.msra.mxu0 0.0
    %2012 = vmatprep.subr.mxu0 0.0
    %2013 = vmatpush1.msra.mxu0 0.0
    %2014 = vmatprep.subr.mxu0 0.0
    %2015 = vmatpush1.msra.mxu0 0.0
    %2016 = vmatprep.subr.mxu0 0.0
    %2017 = vmatpush1.msra.mxu0 0.0
    %2018 = vmatprep.subr.mxu0 0.0
    %2019 = vmatpush1.msra.mxu0 0.0
    %2020 = vmatprep.subr.mxu0 0.0
    %2021 = vmatpush1.msra.mxu0 0.0
    %2022 = vmatprep.subr.mxu0 0.0
    %2023 = vmatpush1.msra.mxu0 0.0
    %2024 = vmatprep.subr.mxu0 0.0
    %2025 = vmatpush1.msra.mxu0 0.0
    %2026 = vmatprep.subr.mxu0 0.0
    %2027 = vmatpush1.msra.mxu0 0.0
    %2028 = vmatprep.subr.mxu0 0.0
    %2029 = vmatpush1.msra.mxu0 0.0
    %2030 = vmatprep.subr.mxu0 0.0
    %2031 = vmatpush1.msra.mxu0 0.0
    %2032 = vmatprep.subr.mxu0 0.0
    %2033 = vmatpush1.msra.mxu0 0.0
    %2034 = vmatprep.mubr.f32.mxu0 0.0
    %2035 = vmatmul.mubr.f32.gmra.mrb[0].mxu0 %v1968
    %v2036 = vpop.f32.mrb[0].mxu0
    %v2037 = vadd.f32 0.0, %v2036
    %v2038 = vpop.f32.mrb[0].mxu0
    %2039 = vdwg.mxu0
    %2041 = vrot.lane.b32.xlu0 %v1844, 32
    %v2042 = vpop.permute.xlu0 %2041
    %v2043 = vsel %vm1025, %v2042, 0
    %2045 = vmatprep.subr.mxu0 0.0
    %2046 = vmatpush1.msra.mxu0 %v1957
    %2047 = vmatprep.subr.mxu0 0.0
    %2048 = vmatpush1.msra.mxu0 %v1958
    %2049 = vmatprep.subr.mxu0 0.0
    %2050 = vmatpush1.msra.mxu0 %v1959
    %2051 = vmatprep.subr.mxu0 0.0
    %2052 = vmatpush1.msra.mxu0 %v1960
    %2053 = vmatprep.subr.mxu0 0.0
    %2054 = vmatpush1.msra.mxu0 0.0
    %2055 = vmatprep.subr.mxu0 0.0
    %2056 = vmatpush1.msra.mxu0 0.0
    %2057 = vmatprep.subr.mxu0 0.0
    %2058 = vmatpush1.msra.mxu0 0.0
    %2059 = vmatprep.subr.mxu0 0.0
    %2060 = vmatpush1.msra.mxu0 0.0
    %2061 = vmatprep.subr.mxu0 0.0
    %2062 = vmatpush1.msra.mxu0 0.0
    %2063 = vmatprep.subr.mxu0 0.0
    %2064 = vmatpush1.msra.mxu0 0.0
    %2065 = vmatprep.subr.mxu0 0.0
    %2066 = vmatpush1.msra.mxu0 0.0
    %2067 = vmatprep.subr.mxu0 0.0
    %2068 = vmatpush1.msra.mxu0 0.0
    %2069 = vmatprep.subr.mxu0 0.0
    %2070 = vmatpush1.msra.mxu0 0.0
    %2071 = vmatprep.subr.mxu0 0.0
    %2072 = vmatpush1.msra.mxu0 0.0
    %2073 = vmatprep.subr.mxu0 0.0
    %2074 = vmatpush1.msra.mxu0 0.0
    %2075 = vmatprep.subr.mxu0 0.0
    %2076 = vmatpush1.msra.mxu0 0.0
    %2077 = vmatprep.subr.mxu0 0.0
    %2078 = vmatpush1.msra.mxu0 0.0
    %2079 = vmatprep.subr.mxu0 0.0
    %2080 = vmatpush1.msra.mxu0 0.0
    %2081 = vmatprep.subr.mxu0 0.0
    %2082 = vmatpush1.msra.mxu0 0.0
    %2083 = vmatprep.subr.mxu0 0.0
    %2084 = vmatpush1.msra.mxu0 0.0
    %2085 = vmatprep.subr.mxu0 0.0
    %2086 = vmatpush1.msra.mxu0 0.0
    %2087 = vmatprep.subr.mxu0 0.0
    %2088 = vmatpush1.msra.mxu0 0.0
    %2089 = vmatprep.subr.mxu0 0.0
    %2090 = vmatpush1.msra.mxu0 0.0
    %2091 = vmatprep.subr.mxu0 0.0
    %2092 = vmatpush1.msra.mxu0 0.0
    %2093 = vmatprep.subr.mxu0 0.0
    %2094 = vmatpush1.msra.mxu0 0.0
    %2095 = vmatprep.subr.mxu0 0.0
    %2096 = vmatpush1.msra.mxu0 0.0
    %2097 = vmatprep.subr.mxu0 0.0
    %2098 = vmatpush1.msra.mxu0 0.0
    %2099 = vmatprep.subr.mxu0 0.0
    %2100 = vmatpush1.msra.mxu0 0.0
    %2101 = vmatprep.subr.mxu0 0.0
    %2102 = vmatpush1.msra.mxu0 0.0
    %2103 = vmatprep.subr.mxu0 0.0
    %2104 = vmatpush1.msra.mxu0 0.0
    %2105 = vmatprep.subr.mxu0 0.0
    %2106 = vmatpush1.msra.mxu0 0.0
    %2107 = vmatprep.subr.mxu0 0.0
    %2108 = vmatpush1.msra.mxu0 0.0
    %2109 = vmatprep.mubr.f32.mxu0 0.0
    %2110 = vmatmul.mubr.f32.gmra.mrb[0].mxu0 %v2043
    %v2111 = vpop.f32.mrb[0].mxu0
    %v2112 = vadd.f32 %v2037, %v2111
    %v2113 = vpop.f32.mrb[0].mxu0
    %2114 = vdwg.mxu0
    %v2115 = vld [vmem:[%s12] sm:$0x1]
    %v2117 = vlaneseq
    %v2118 = vshrl.u32 %v2117, 7
    %v2119 = vsub.s32 0, %v2118
    %v2120 = vrot.slane %v2115, %v2119
    %v2122 = vadd.f32 %v2112, %v2120
    %vm2123 = vcmask 31744
    %2124 = vst.msk [vmem:[%s13] sm:$0xff] %vm2123, %v2122
    // Predicated region
    $region66: #{tpu_custom_call.1} parent=1 // pred_check
      _
    $region67: #{tpu_custom_call.1} parent=1 // pred_check_branch
      %2126 = sbr.rel (0) target = $region69
    $region68: #{tpu_custom_call.1} parent=1 // pred_region
      _
    $region69: #{tpu_custom_call.1} parent=1 // pred_fallthru
      _
    // Predicated region
    $region70: #{tpu_custom_call.1} parent=1 // pred_check
      _
    $region71: #{tpu_custom_call.1} parent=1 // pred_check_branch
      %2128 = sbr.rel (0) target = $region73
    $region72: #{tpu_custom_call.1} parent=1 // pred_region
      _
    $region73: #{tpu_custom_call.1} parent=1 // pred_fallthru
      _
    %2129 = vsyncpa [#allocation4], 1
    %2130 = vsyncpa [#allocation6], 1

</llo_original>
